<compile_context>
chip_gen: v7x
topology: tpu7x:2x2x1
jax: 0.10.0
libtpu: 0.0.40
codegen_flags: <defaults>
</compile_context>

<pallas_src>
import math
import functools

import numpy as np
import jax
import jax.numpy as jnp
from jax import lax
from jax.experimental import pallas as pl
from jax.experimental.pallas import tpu as pltpu


# ---------------------------------------------------------------------------
# Tile helpers
# ---------------------------------------------------------------------------
def _pick_tile(dim, target, align):
    """Largest tile <= target that divides `dim` and is a multiple of `align`;
    falls back to the full dim (always a legal block size)."""
    if dim <= target:
        return dim
    t = target
    while t >= align:
        if dim % t == 0:
            return t
        t //= 2
    return dim


# ---------------------------------------------------------------------------
# Kernel 1: tiled linear  Y = X @ W^T + b   (X: (M, D_in), W: (D_out, D_in))
# ---------------------------------------------------------------------------
def _linear_kernel(x_ref, w_ref, b_ref, o_ref, acc_ref):
    @pl.when(pl.program_id(2) == 0)
    def _():
        acc_ref[...] = jnp.zeros_like(acc_ref)

    # Contract the last dims of X and W directly -> no in-kernel W transpose.
    acc_ref[...] += lax.dot_general(
        x_ref[...], w_ref[...],
        dimension_numbers=(((1,), (1,)), ((), ())),
        preferred_element_type=jnp.float32,
    )

    @pl.when(pl.program_id(2) == pl.num_programs(2) - 1)
    def _():
        o_ref[...] = (acc_ref[...] + b_ref[...]).astype(o_ref.dtype)


def linear(x2d, w, b, *, out_dtype=jnp.float32, use_bf16=False,
           tm=512, tn=256, tk=512):
    """x2d: (M, D_in), w: (D_out, D_in), b: (D_out,) -> (M, D_out)."""
    M, D_in = x2d.shape
    D_out = w.shape[0]
    if use_bf16:  # halve DMA bytes + 2x+ MXU rate on v6e/v7x; accumulate stays f32
        x2d = x2d.astype(jnp.bfloat16)
        w = w.astype(jnp.bfloat16)

    tm = _pick_tile(M, tm, 8)        # second-to-last dims: multiple of 8 (or full)
    tn = _pick_tile(D_out, tn, 128)  # last dim of output / 2nd of W: 128-aligned
    tk = _pick_tile(D_in, tk, 128)   # contraction dim: 128-aligned
    b2d = b.reshape(1, D_out).astype(jnp.float32)

    in_b = x2d.dtype.itemsize
    cost = pl.CostEstimate(
        flops=2 * M * D_out * D_in,
        transcendentals=0,
        bytes_accessed=int(in_b * (M * D_in + D_out * D_in)
                           + jnp.dtype(out_dtype).itemsize * M * D_out
                           + 4 * D_out),
    )

    return pl.pallas_call(
        _linear_kernel,
        out_shape=jax.ShapeDtypeStruct((M, D_out), out_dtype),
        grid=(M // tm, D_out // tn, D_in // tk),
        in_specs=[
            pl.BlockSpec((tm, tk), lambda i, j, k: (i, k)),
            pl.BlockSpec((tn, tk), lambda i, j, k: (j, k)),
            pl.BlockSpec((1, tn), lambda i, j, k: (0, j)),
        ],
        out_specs=pl.BlockSpec((tm, tn), lambda i, j, k: (i, j)),
        scratch_shapes=[pltpu.VMEM((tm, tn), jnp.float32)],
        compiler_params=pltpu.CompilerParams(
            dimension_semantics=("parallel", "parallel", "arbitrary"),
        ),
        cost_estimate=cost,
    )(x2d, w, b2d)


# ---------------------------------------------------------------------------
# Kernel 2: multi-head scaled dot-product attention, q-tiled grid=(B, Sq//tq).
# Q/K/V arrive as d_model-wide column blocks of (possibly packed) activations.
# ---------------------------------------------------------------------------
def _attn_kernel(*refs, num_heads, has_mask, compute_dtype, approx_recip):
    if has_mask:
        q_ref, k_ref, v_ref, m_ref, o_ref, w_ref = refs
    else:
        q_ref, k_ref, v_ref, o_ref, w_ref = refs
        m_ref = None

    d_model = q_ref.shape[-1]
    depth = d_model // num_heads
    scale = 1.0 / math.sqrt(depth)

    # Fold 1/sqrt(depth) into Q once (O(tq*d_model), not O(tq*Sk)); K never transposed.
    q = (q_ref[0].astype(jnp.float32) * scale).astype(compute_dtype)  # (tq, d_model)
    k = k_ref[0].astype(compute_dtype)                                # (Sk, d_model)
    v = v_ref[0].astype(compute_dtype)                                # (Sk, d_model)

    if m_ref is not None:
        # In-kernel broadcast of the (possibly size-1 dims) mask block; stays f32.
        neg_mask = m_ref[0].astype(jnp.float32) * (-1e9)              # (Hm, qm, skm)

    for h in range(num_heads):                                        # static unroll
        lo = h * depth
        qh = q[:, lo:lo + depth]
        kh = k[:, lo:lo + depth]
        vh = v[:, lo:lo + depth]

        # (tq, Sk) scores in f32.
        scores = lax.dot_general(
            qh, kh, dimension_numbers=(((1,), (1,)), ((), ())),
            preferred_element_type=jnp.float32)

        if m_ref is not None:
            mh = neg_mask[h] if neg_mask.shape[0] > 1 else neg_mask[0]
            scores = scores + mh                                      # broadcasts

        # Numerically-stable softmax (f32), matches F.softmax.
        mx = jnp.max(scores, axis=-1, keepdims=True)
        e = jnp.exp(scores - mx)
        denom = jnp.sum(e, axis=-1, keepdims=True)
        weights = e * pl.reciprocal(denom, approx=approx_recip)       # (tq, Sk)

        w_ref[0, h] = weights.astype(w_ref.dtype)
        ctx = jnp.dot(weights.astype(compute_dtype), vh,
                      preferred_element_type=jnp.float32)             # (tq, depth)
        # Incremental per-head store (no concatenate, no held-live head results).
        o_ref[0, :, lo:lo + depth] = ctx.astype(o_ref.dtype)


# --- module-level index maps (bound via functools.partial) -----------------
def _blk_q_map(b, qi, col):
    return (b, qi, col)


def _blk_kv_map(b, qi, col):           # invariant in the q-tile axis -> resident
    return (b, 0, col)


def _blk_mask_map(b, qi, b_sel, q_sel):
    return (b if b_sel else 0, 0, qi if q_sel else 0, 0)


def _blk_out_map(b, qi):
    return (b, qi, 0)


def _blk_w_map(b, qi):
    return (b, 0, qi, 0)


def _attention_call(q_arr, k_arr, v_arr, q_col, k_col, v_col, d_model, num_heads,
                    mask, *, use_bf16):
    """q/k/v_arr: (B, S*, n*d_model) activations; *_col selects the d_model-wide
    column block holding that projection (0 for un-packed arrays)."""
    B, Sq, _ = q_arr.shape
    Sk = k_arr.shape[1]
    compute_dtype = jnp.bfloat16 if use_bf16 else jnp.float32
    ctx_dtype = q_arr.dtype
    in_bytes = q_arr.dtype.itemsize
    ctx_bytes = jnp.dtype(ctx_dtype).itemsize

    has_mask = mask is not None
    if has_mask:
        m4 = jnp.reshape(mask, (1,) * (4 - mask.ndim) + tuple(mask.shape))
        Bm, Hm, Sqm, Skm = m4.shape
        m_item = m4.dtype.itemsize
    else:
        m4 = None
        Bm = Hm = Sqm = Skm = 1
        m_item = 0

    # --- pick tq under an explicit per-step VMEM budget (double-buffered blocks) ---
    def blk_bytes(tq):
        w_blk = num_heads * tq * Sk * 4                       # f32 weights out (dominant)
        qo_blk = tq * d_model * (in_bytes + ctx_bytes)        # q in + context out
        kv_blk = 2 * Sk * d_model * in_bytes                  # resident K and V
        m_blk = Hm * (tq if Sqm == Sq else 1) * Skm * m_item
        return 2 * (w_blk + qo_blk + kv_blk + m_blk)

    budget = 20 * 1024 * 1024
    cands = sorted({d for d in range(8, Sq + 1, 8) if Sq % d == 0} | {Sq}, reverse=True)
    tq = next((t for t in cands if blk_bytes(t) <= budget), cands[-1])
    n_qt = Sq // tq
    # Explicit scoped-VMEM limit: >= default 32 MiB, <= 48 MiB (safe under v7x's 64 MiB).
    vmem_limit = int(min(48 << 20, max(32 << 20, blk_bytes(tq) + (12 << 20))))

    kernel = functools.partial(
        _attn_kernel, num_heads=num_heads, has_mask=has_mask,
        compute_dtype=compute_dtype, approx_recip=use_bf16)

    in_specs = [
        pl.BlockSpec((1, tq, d_model), functools.partial(_blk_q_map, col=q_col)),
        pl.BlockSpec((1, Sk, d_model), functools.partial(_blk_kv_map, col=k_col)),
        pl.BlockSpec((1, Sk, d_model), functools.partial(_blk_kv_map, col=v_col)),
    ]
    inputs = [q_arr, k_arr, v_arr]
    if has_mask:
        q_blk = tq if Sqm == Sq else 1
        in_specs.append(pl.BlockSpec(
            (1, Hm, q_blk, Skm),
            functools.partial(_blk_mask_map, b_sel=(Bm != 1), q_sel=(Sqm == Sq))))
        inputs.append(m4)

    cost = pl.CostEstimate(
        flops=int(4 * B * Sq * Sk * d_model),                 # QK^T and PV matmuls
        transcendentals=int(B * num_heads * Sq * Sk),         # exp in softmax
        bytes_accessed=int(in_bytes * B * (Sq + 2 * Sk) * d_model
                           + m_item * Bm * Hm * Sqm * Skm
                           + ctx_bytes * B * Sq * d_model
                           + 4 * B * num_heads * Sq * Sk),
    )

    return pl.pallas_call(
        kernel,
        out_shape=(
            jax.ShapeDtypeStruct((B, Sq, d_model), ctx_dtype),
            jax.ShapeDtypeStruct((B, num_heads, Sq, Sk), jnp.float32),
        ),
        grid=(B, n_qt),
        in_specs=in_specs,
        out_specs=(
            pl.BlockSpec((1, tq, d_model), _blk_out_map),
            pl.BlockSpec((1, num_heads, tq, Sk), _blk_w_map),
        ),
        compiler_params=pltpu.CompilerParams(
            dimension_semantics=("parallel", "parallel"),
            vmem_limit_bytes=vmem_limit,
        ),
        cost_estimate=cost,
    )(*inputs)


# ---------------------------------------------------------------------------
# Module-equivalent wrapper
# ---------------------------------------------------------------------------
def init_mha_params(key, d_model):
    """Deterministic nn.Linear-style init: U(-1/sqrt(fan_in), 1/sqrt(fan_in))."""
    bound = 1.0 / math.sqrt(d_model)
    names = ["wq", "wk", "wv", "fc_out"]
    params = {}
    keys = jax.random.split(key, 2 * len(names))
    for i, name in enumerate(names):
        wk_, bk_ = keys[2 * i], keys[2 * i + 1]
        params[name + "_w"] = jax.random.uniform(
            wk_, (d_model, d_model), jnp.float32, -bound, bound)
        params[name + "_b"] = jax.random.uniform(
            bk_, (d_model,), jnp.float32, -bound, bound)
    return params


@functools.partial(jax.jit, static_argnames=("num_heads", "use_bf16"))
def _mha_self(x, params, num_heads, mask, use_bf16):
    """Self-attention path: fused QKV projection (X read from HBM once)."""
    B, S, d_model = x.shape
    proj_dtype = jnp.bfloat16 if use_bf16 else jnp.float32
    # Fused (3*d_model, d_model) weight; in a real model this concat lives in the params.
    w_qkv = jnp.concatenate([params["wq_w"], params["wk_w"], params["wv_w"]], axis=0)
    b_qkv = jnp.concatenate([params["wq_b"], params["wk_b"], params["wv_b"]], axis=0)
    qkvp = linear(x.reshape(B * S, d_model), w_qkv, b_qkv,
                  out_dtype=proj_dtype, use_bf16=use_bf16).reshape(B, S, 3 * d_model)
    attn, weights = _attention_call(qkvp, qkvp, qkvp, 0, 1, 2, d_model, num_heads,
                                    mask, use_bf16=use_bf16)
    out = linear(attn.reshape(B * S, d_model), params["fc_out_w"], params["fc_out_b"],
                 out_dtype=jnp.float32, use_bf16=use_bf16).reshape(B, S, d_model)
    return out, weights


@functools.partial(jax.jit, static_argnames=("num_heads", "use_bf16"))
def _mha_general(q, k, v, params, num_heads, mask, use_bf16):
    """General (cross-attention) path: separate projections."""
    B, Sq, d_model = q.shape
    proj_dtype = jnp.bfloat16 if use_bf16 else jnp.float32

    def proj(x, w, b):
        Bx, Sx, _ = x.shape
        return linear(x.reshape(Bx * Sx, d_model), w, b,
                      out_dtype=proj_dtype, use_bf16=use_bf16).reshape(Bx, Sx, d_model)

    qp = proj(q, params["wq_w"], params["wq_b"])
    kp = proj(k, params["wk_w"], params["wk_b"])
    vp = proj(v, params["wv_w"], params["wv_b"])
    attn, weights = _attention_call(qp, kp, vp, 0, 0, 0, d_model, num_heads,
                                    mask, use_bf16=use_bf16)
    out = linear(attn.reshape(B * Sq, d_model), params["fc_out_w"], params["fc_out_b"],
                 out_dtype=jnp.float32, use_bf16=use_bf16).reshape(B, Sq, d_model)
    return out, weights


def multi_head_attention(q, k, v, params, num_heads, mask=None, use_bf16=False):
    d_model = q.shape[-1]
    # Fused-QKV path needs the packed last-dim blocks to be 128-lane aligned.
    if (q is k) and (k is v) and (d_model % 128 == 0):
        return _mha_self(q, params, num_heads=num_heads, mask=mask, use_bf16=use_bf16)
    return _mha_general(q, k, v, params, num_heads=num_heads, mask=mask,
                        use_bf16=use_bf16)


# ---------------------------------------------------------------------------
# float64 numpy reference (host) of the PyTorch module's forward
# ---------------------------------------------------------------------------
def reference_mha(q, k, v, params, num_heads, mask=None):
    q64 = np.asarray(q, np.float64)
    k64 = np.asarray(k, np.float64)
    v64 = np.asarray(v, np.float64)
    d_model = q64.shape[-1]
    depth = d_model // num_heads
    B, Sq = q64.shape[0], q64.shape[1]

    def lin(x, w, b):
        return x @ np.asarray(w, np.float64).T + np.asarray(b, np.float64)

    def split(x):
        Bx, Sx, _ = x.shape
        return x.reshape(Bx, Sx, num_heads, depth).transpose(0, 2, 1, 3)

    qp = split(lin(q64, params["wq_w"], params["wq_b"]))
    kp = split(lin(k64, params["wk_w"], params["wk_b"]))
    vp = split(lin(v64, params["wv_w"], params["wv_b"]))
    scores = np.einsum("bhqd,bhkd->bhqk", qp, kp) / math.sqrt(depth)
    if mask is not None:
        scores = scores + np.asarray(mask, np.float64) * (-1e9)
    scores = scores - scores.max(-1, keepdims=True)
    e = np.exp(scores)
    w_ = e / e.sum(-1, keepdims=True)
    ctx = np.einsum("bhqk,bhkd->bhqd", w_, vp)
    ctx = ctx.transpose(0, 2, 1, 3).reshape(B, Sq, d_model)
    out = lin(ctx, params["fc_out_w"], params["fc_out_b"])
    return out, w_


# ---------------------------------------------------------------------------
if __name__ == "__main__":
    d_model, num_heads, batch, seq = 128, 4, 2, 8

    key = jax.random.PRNGKey(0)
    k_params, k_x, k_q, k_k, k_v = jax.random.split(key, 5)
    params = init_mha_params(k_params, d_model)

    x = jax.random.normal(k_x, (batch, seq, d_model), jnp.float32)
    causal = jnp.triu(jnp.ones((seq, seq), jnp.float32), k=1).reshape(1, 1, seq, seq)

    # 1) Self-attention (fused-QKV path) with a broadcastable mask, f32 path.
    out1, w1 = multi_head_attention(x, x, x, params, num_heads, mask=causal)
    jax.block_until_ready((out1, w1))
    assert out1.shape == (batch, seq, d_model)
    assert w1.shape == (batch, num_heads, seq, seq)
    ref1_o, ref1_w = reference_mha(x, x, x, params, num_heads, mask=causal)
    assert np.allclose(np.asarray(out1), ref1_o, atol=1e-3, rtol=1e-3)
    assert np.allclose(np.asarray(w1), ref1_w, atol=1e-3, rtol=1e-3)

    # 2) Cross-attention (distinct q/k/v, un-fused path), no mask, f32 path.
    q_in = jax.random.normal(k_q, (batch, seq, d_model), jnp.float32)
    k_in = jax.random.normal(k_k, (batch, seq, d_model), jnp.float32)
    v_in = jax.random.normal(k_v, (batch, seq, d_model), jnp.float32)
    out2, w2 = multi_head_attention(q_in, k_in, v_in, params, num_heads)
    jax.block_until_ready((out2, w2))
    ref2_o, ref2_w = reference_mha(q_in, k_in, v_in, params, num_heads)
    assert np.allclose(np.asarray(out2), ref2_o, atol=1e-3, rtol=1e-3)
    assert np.allclose(np.asarray(w2), ref2_w, atol=1e-3, rtol=1e-3)

    # 3) bf16-MXU fast path (the big win on v6e/v7x); loose tolerance.
    out3, w3 = multi_head_attention(x, x, x, params, num_heads, mask=causal,
                                    use_bf16=True)
    jax.block_until_ready((out3, w3))
    assert np.allclose(np.asarray(out3), ref1_o, atol=5e-2, rtol=5e-2)
    assert np.allclose(np.asarray(w3), ref1_w, atol=5e-2, rtol=5e-2)

    print("KERNEL_OK")
</pallas_src>

<mosaic_0001>
module attributes {stable_mosaic.version = 11 : i64} {
  func.func @_linear_kernel(%arg0: i32, %arg1: i32, %arg2: i32, %arg3: memref<16x128xf32, #tpu.memory_space<vmem>>, %arg4: memref<128x128xf32, #tpu.memory_space<vmem>>, %arg5: memref<1x128xf32, #tpu.memory_space<vmem>>, %arg6: memref<16x128xf32, #tpu.memory_space<vmem>>, %arg7: memref<16x128xf32, #tpu.memory_space<vmem>>) attributes {dimension_semantics = [#tpu.dimension_semantics<parallel>, #tpu.dimension_semantics<parallel>, #tpu.dimension_semantics<arbitrary>], iteration_bounds = array<i64: 1, 3, 1>, scalar_prefetch = 0 : i64, scratch_operands = 1 : i64, tpu.core_type = #tpu.core_type<tc>, window_params = [{transform_indices = @transform_0, window_bounds = array<i64: 16, 128>}, {transform_indices = @transform_1, window_bounds = array<i64: 128, 128>}, {transform_indices = @transform_2, window_bounds = array<i64: 1, 128>}, {transform_indices = @transform_3, window_bounds = array<i64: 16, 128>}]} {
    %c0_i32 = arith.constant 0 : i32
    %0 = arith.cmpi eq, %arg2, %c0_i32 : i32
    %1 = arith.extui %0 : i1 to i32
    %c0_i32_0 = arith.constant 0 : i32
    %2 = arith.cmpi ne, %1, %c0_i32_0 : i32
    scf.if %2 {
      %cst_10 = arith.constant 0.000000e+00 : f32
      %12 = vector.broadcast %cst_10 : f32 to vector<16x128xf32>
      %c0_11 = arith.constant 0 : index
      %c0_12 = arith.constant 0 : index
      %13 = vector.load %arg7[%c0_11, %c0_12] : memref<16x128xf32, #tpu.memory_space<vmem>>, vector<16x128xf32>
      tpu.vector_store %arg7[%c0_11, %c0_12], %12 {strides = array<i32>} : memref<16x128xf32, #tpu.memory_space<vmem>>, vector<16x128xf32>,
    } else {
    }
    %c0 = arith.constant 0 : index
    %c0_1 = arith.constant 0 : index
    %3 = vector.load %arg7[%c0, %c0_1] : memref<16x128xf32, #tpu.memory_space<vmem>>, vector<16x128xf32>
    %c0_2 = arith.constant 0 : index
    %c0_3 = arith.constant 0 : index
    %4 = vector.load %arg3[%c0_2, %c0_3] : memref<16x128xf32, #tpu.memory_space<vmem>>, vector<16x128xf32>
    %c0_4 = arith.constant 0 : index
    %c0_5 = arith.constant 0 : index
    %5 = vector.load %arg4[%c0_4, %c0_5] : memref<128x128xf32, #tpu.memory_space<vmem>>, vector<128x128xf32>
    %cst = arith.constant dense<0.000000e+00> : vector<16x128xf32>
    %6 = tpu.matmul %4, %5, %cst {dimension_numbers = #tpu.dot_dimension_numbers<[1], [1], [0], [0], [0, 0, 1, 0], [], []>} : vector<16x128xf32>, vector<128x128xf32>, vector<16x128xf32> -> vector<16x128xf32>
    %7 = arith.addf %3, %6 : vector<16x128xf32>
    %c0_6 = arith.constant 0 : index
    %c0_7 = arith.constant 0 : index
    %8 = vector.load %arg7[%c0_6, %c0_7] : memref<16x128xf32, #tpu.memory_space<vmem>>, vector<16x128xf32>
    tpu.vector_store %arg7[%c0_6, %c0_7], %7 {strides = array<i32>} : memref<16x128xf32, #tpu.memory_space<vmem>>, vector<16x128xf32>,
    %c0_i32_8 = arith.constant 0 : i32
    %9 = arith.cmpi eq, %arg2, %c0_i32_8 : i32
    %10 = arith.extui %9 : i1 to i32
    %c0_i32_9 = arith.constant 0 : i32
    %11 = arith.cmpi ne, %10, %c0_i32_9 : i32
    scf.if %11 {
      %c0_10 = arith.constant 0 : index
      %c0_11 = arith.constant 0 : index
      %12 = vector.load %arg7[%c0_10, %c0_11] : memref<16x128xf32, #tpu.memory_space<vmem>>, vector<16x128xf32>
      %c0_12 = arith.constant 0 : index
      %c0_13 = arith.constant 0 : index
      %13 = vector.load %arg5[%c0_12, %c0_13] : memref<1x128xf32, #tpu.memory_space<vmem>>, vector<1x128xf32>
      %14 = vector.broadcast %13 : vector<1x128xf32> to vector<16x128xf32>
      %15 = arith.addf %12, %14 : vector<16x128xf32>
      %c0_14 = arith.constant 0 : index
      %c0_15 = arith.constant 0 : index
      %16 = vector.load %arg6[%c0_14, %c0_15] : memref<16x128xf32, #tpu.memory_space<vmem>>, vector<16x128xf32>
      tpu.vector_store %arg6[%c0_14, %c0_15], %15 {strides = array<i32>} : memref<16x128xf32, #tpu.memory_space<vmem>>, vector<16x128xf32>,
    } else {
    }
    return
  }
  func.func @transform_0(%arg0: i32, %arg1: i32, %arg2: i32) -> (i32, i32) {
    %c0_i32 = arith.constant 0 : i32
    return %arg0, %arg2 : i32, i32
  }
  func.func @transform_1(%arg0: i32, %arg1: i32, %arg2: i32) -> (i32, i32) {
    %c0_i32 = arith.constant 0 : i32
    return %arg1, %arg2 : i32, i32
  }
  func.func @transform_2(%arg0: i32, %arg1: i32, %arg2: i32) -> (i32, i32) {
    %c0_i32 = arith.constant 0 : i32
    %c0_i32_0 = arith.constant 0 : i32
    return %c0_i32, %arg1 : i32, i32
  }
  func.func @transform_3(%arg0: i32, %arg1: i32, %arg2: i32) -> (i32, i32) {
    %c0_i32 = arith.constant 0 : i32
    return %arg0, %arg1 : i32, i32
  }
}

module attributes {stable_mosaic.version = 11 : i64} {
  func.func @_attn_kernel(%arg0: i32, %arg1: i32, %arg2: memref<1x8x128xf32, #tpu.memory_space<vmem>>, %arg3: memref<1x8x128xf32, #tpu.memory_space<vmem>>, %arg4: memref<1x8x128xf32, #tpu.memory_space<vmem>>, %arg5: memref<1x1x8x8xf32, #tpu.memory_space<vmem>>, %arg6: memref<1x8x128xf32, #tpu.memory_space<vmem>>, %arg7: memref<1x4x8x8xf32, #tpu.memory_space<vmem>>) attributes {dimension_semantics = [#tpu.dimension_semantics<parallel>, #tpu.dimension_semantics<parallel>], iteration_bounds = array<i64: 2, 1>, scalar_prefetch = 0 : i64, scratch_operands = 0 : i64, tpu.core_type = #tpu.core_type<tc>, window_params = [{transform_indices = @transform_0, window_bounds = array<i64: 1, 8, 128>}, {transform_indices = @transform_1, window_bounds = array<i64: 1, 8, 128>}, {transform_indices = @transform_2, window_bounds = array<i64: 1, 8, 128>}, {transform_indices = @transform_3, window_bounds = array<i64: 1, 1, 8, 8>}, {transform_indices = @transform_4, window_bounds = array<i64: 1, 8, 128>}, {transform_indices = @transform_5, window_bounds = array<i64: 1, 4, 8, 8>}]} {
    %c0 = arith.constant 0 : index
    %c0_0 = arith.constant 0 : index
    %c0_1 = arith.constant 0 : index
    %0 = vector.load %arg2[%c0, %c0_0, %c0_1] : memref<1x8x128xf32, #tpu.memory_space<vmem>>, vector<1x8x128xf32>
    %1 = vector.shape_cast %0 : vector<1x8x128xf32> to vector<8x128xf32>
    %cst = arith.constant 0.176776692 : f32
    %2 = vector.broadcast %cst : f32 to vector<8x128xf32>
    %3 = arith.mulf %1, %2 : vector<8x128xf32>
    %c0_2 = arith.constant 0 : index
    %c0_3 = arith.constant 0 : index
    %c0_4 = arith.constant 0 : index
    %4 = vector.load %arg3[%c0_2, %c0_3, %c0_4] : memref<1x8x128xf32, #tpu.memory_space<vmem>>, vector<1x8x128xf32>
    %5 = vector.shape_cast %4 : vector<1x8x128xf32> to vector<8x128xf32>
    %c0_5 = arith.constant 0 : index
    %c0_6 = arith.constant 0 : index
    %c0_7 = arith.constant 0 : index
    %6 = vector.load %arg4[%c0_5, %c0_6, %c0_7] : memref<1x8x128xf32, #tpu.memory_space<vmem>>, vector<1x8x128xf32>
    %7 = vector.shape_cast %6 : vector<1x8x128xf32> to vector<8x128xf32>
    %c0_8 = arith.constant 0 : index
    %c0_9 = arith.constant 0 : index
    %c0_10 = arith.constant 0 : index
    %c0_11 = arith.constant 0 : index
    %8 = vector.load %arg5[%c0_8, %c0_9, %c0_10, %c0_11] : memref<1x1x8x8xf32, #tpu.memory_space<vmem>>, vector<1x1x8x8xf32>
    %9 = vector.shape_cast %8 : vector<1x1x8x8xf32> to vector<1x8x8xf32>
    %cst_12 = arith.constant -1.000000e+09 : f32
    %10 = vector.broadcast %cst_12 : f32 to vector<1x8x8xf32>
    %11 = arith.mulf %9, %10 : vector<1x8x8xf32>
    %12 = vector.extract_strided_slice %3 {offsets = [0, 0], sizes = [8, 32], strides = [1, 1]} : vector<8x128xf32> to vector<8x32xf32>
    %13 = vector.extract_strided_slice %5 {offsets = [0, 0], sizes = [8, 32], strides = [1, 1]} : vector<8x128xf32> to vector<8x32xf32>
    %14 = vector.extract_strided_slice %7 {offsets = [0, 0], sizes = [8, 32], strides = [1, 1]} : vector<8x128xf32> to vector<8x32xf32>
    %cst_13 = arith.constant dense<0.000000e+00> : vector<8x8xf32>
    %15 = tpu.matmul %12, %13, %cst_13 {dimension_numbers = #tpu.dot_dimension_numbers<[1], [1], [0], [0], [0, 0, 1, 0], [], []>} : vector<8x32xf32>, vector<8x32xf32>, vector<8x8xf32> -> vector<8x8xf32>
    %16 = vector.shape_cast %11 : vector<1x8x8xf32> to vector<8x8xf32>
    %17 = arith.addf %15, %16 : vector<8x8xf32>
    %cst_14 = arith.constant dense<0xFF800000> : vector<8xf32>
    %18 = vector.multi_reduction <maximumf>, %17, %cst_14 [1] : vector<8x8xf32> to vector<8xf32>
    %19 = vector.shape_cast %18 : vector<8xf32> to vector<8x1xf32>
    %20 = vector.broadcast %19 : vector<8x1xf32> to vector<8x8xf32>
    %21 = arith.subf %17, %20 : vector<8x8xf32>
    %22 = math.exp %21 : vector<8x8xf32>
    %cst_15 = arith.constant dense<0.000000e+00> : vector<8xf32>
    %23 = vector.multi_reduction <add>, %22, %cst_15 [1] : vector<8x8xf32> to vector<8xf32>
    %24 = vector.shape_cast %23 : vector<8xf32> to vector<8x1xf32>
    %25 = tpu.reciprocal %24 : vector<8x1xf32> -> vector<8x1xf32>
    %26 = vector.broadcast %25 : vector<8x1xf32> to vector<8x8xf32>
    %27 = arith.mulf %22, %26 : vector<8x8xf32>
    %c0_16 = arith.constant 0 : index
    %c0_17 = arith.constant 0 : index
    %c0_18 = arith.constant 0 : index
    %c0_19 = arith.constant 0 : index
    %28 = vector.load %arg7[%c0_16, %c0_17, %c0_18, %c0_19] : memref<1x4x8x8xf32, #tpu.memory_space<vmem>>, vector<1x1x8x8xf32>
    %29 = vector.shape_cast %28 : vector<1x1x8x8xf32> to vector<8x8xf32>
    %30 = vector.shape_cast %27 : vector<8x8xf32> to vector<1x1x8x8xf32>
    tpu.vector_store %arg7[%c0_16, %c0_17, %c0_18, %c0_19], %30 {strides = array<i32>} : memref<1x4x8x8xf32, #tpu.memory_space<vmem>>, vector<1x1x8x8xf32>,
    %cst_20 = arith.constant dense<0.000000e+00> : vector<8x32xf32>
    %31 = tpu.matmul %27, %14, %cst_20 {dimension_numbers = #tpu.dot_dimension_numbers<[1], [0], [0], [1], [0, 0, 1, 1], [], []>} : vector<8x8xf32>, vector<8x32xf32>, vector<8x32xf32> -> vector<8x32xf32>
    %c0_21 = arith.constant 0 : index
    %c0_22 = arith.constant 0 : index
    %c0_23 = arith.constant 0 : index
    %32 = vector.load %arg6[%c0_21, %c0_22, %c0_23] : memref<1x8x128xf32, #tpu.memory_space<vmem>>, vector<1x8x32xf32>
    %33 = vector.shape_cast %32 : vector<1x8x32xf32> to vector<8x32xf32>
    %34 = vector.shape_cast %31 : vector<8x32xf32> to vector<1x8x32xf32>
    tpu.vector_store %arg6[%c0_21, %c0_22, %c0_23], %34 {strides = array<i32>} : memref<1x8x128xf32, #tpu.memory_space<vmem>>, vector<1x8x32xf32>,
    %35 = vector.extract_strided_slice %3 {offsets = [0, 32], sizes = [8, 32], strides = [1, 1]} : vector<8x128xf32> to vector<8x32xf32>
    %36 = vector.extract_strided_slice %5 {offsets = [0, 32], sizes = [8, 32], strides = [1, 1]} : vector<8x128xf32> to vector<8x32xf32>
    %37 = vector.extract_strided_slice %7 {offsets = [0, 32], sizes = [8, 32], strides = [1, 1]} : vector<8x128xf32> to vector<8x32xf32>
    %cst_24 = arith.constant dense<0.000000e+00> : vector<8x8xf32>
    %38 = tpu.matmul %35, %36, %cst_24 {dimension_numbers = #tpu.dot_dimension_numbers<[1], [1], [0], [0], [0, 0, 1, 0], [], []>} : vector<8x32xf32>, vector<8x32xf32>, vector<8x8xf32> -> vector<8x8xf32>
    %39 = vector.shape_cast %11 : vector<1x8x8xf32> to vector<8x8xf32>
    %40 = arith.addf %38, %39 : vector<8x8xf32>
    %cst_25 = arith.constant dense<0xFF800000> : vector<8xf32>
    %41 = vector.multi_reduction <maximumf>, %40, %cst_25 [1] : vector<8x8xf32> to vector<8xf32>
    %42 = vector.shape_cast %41 : vector<8xf32> to vector<8x1xf32>
    %43 = vector.broadcast %42 : vector<8x1xf32> to vector<8x8xf32>
    %44 = arith.subf %40, %43 : vector<8x8xf32>
    %45 = math.exp %44 : vector<8x8xf32>
    %cst_26 = arith.constant dense<0.000000e+00> : vector<8xf32>
    %46 = vector.multi_reduction <add>, %45, %cst_26 [1] : vector<8x8xf32> to vector<8xf32>
    %47 = vector.shape_cast %46 : vector<8xf32> to vector<8x1xf32>
    %48 = tpu.reciprocal %47 : vector<8x1xf32> -> vector<8x1xf32>
    %49 = vector.broadcast %48 : vector<8x1xf32> to vector<8x8xf32>
    %50 = arith.mulf %45, %49 : vector<8x8xf32>
    %c0_27 = arith.constant 0 : index
    %c1 = arith.constant 1 : index
    %c0_28 = arith.constant 0 : index
    %c0_29 = arith.constant 0 : index
    %51 = vector.load %arg7[%c0_27, %c1, %c0_28, %c0_29] : memref<1x4x8x8xf32, #tpu.memory_space<vmem>>, vector<1x1x8x8xf32>
    %52 = vector.shape_cast %51 : vector<1x1x8x8xf32> to vector<8x8xf32>
    %53 = vector.shape_cast %50 : vector<8x8xf32> to vector<1x1x8x8xf32>
    tpu.vector_store %arg7[%c0_27, %c1, %c0_28, %c0_29], %53 {strides = array<i32>} : memref<1x4x8x8xf32, #tpu.memory_space<vmem>>, vector<1x1x8x8xf32>,
    %cst_30 = arith.constant dense<0.000000e+00> : vector<8x32xf32>
    %54 = tpu.matmul %50, %37, %cst_30 {dimension_numbers = #tpu.dot_dimension_numbers<[1], [0], [0], [1], [0, 0, 1, 1], [], []>} : vector<8x8xf32>, vector<8x32xf32>, vector<8x32xf32> -> vector<8x32xf32>
    %c0_31 = arith.constant 0 : index
    %c0_32 = arith.constant 0 : index
    %c32 = arith.constant 32 : index
    %55 = vector.load %arg6[%c0_31, %c0_32, %c32] : memref<1x8x128xf32, #tpu.memory_space<vmem>>, vector<1x8x32xf32>
    %56 = vector.shape_cast %55 : vector<1x8x32xf32> to vector<8x32xf32>
    %57 = vector.shape_cast %54 : vector<8x32xf32> to vector<1x8x32xf32>
    tpu.vector_store %arg6[%c0_31, %c0_32, %c32], %57 {strides = array<i32>} : memref<1x8x128xf32, #tpu.memory_space<vmem>>, vector<1x8x32xf32>,
    %58 = vector.extract_strided_slice %3 {offsets = [0, 64], sizes = [8, 32], strides = [1, 1]} : vector<8x128xf32> to vector<8x32xf32>
    %59 = vector.extract_strided_slice %5 {offsets = [0, 64], sizes = [8, 32], strides = [1, 1]} : vector<8x128xf32> to vector<8x32xf32>
    %60 = vector.extract_strided_slice %7 {offsets = [0, 64], sizes = [8, 32], strides = [1, 1]} : vector<8x128xf32> to vector<8x32xf32>
    %cst_33 = arith.constant dense<0.000000e+00> : vector<8x8xf32>
    %61 = tpu.matmul %58, %59, %cst_33 {dimension_numbers = #tpu.dot_dimension_numbers<[1], [1], [0], [0], [0, 0, 1, 0], [], []>} : vector<8x32xf32>, vector<8x32xf32>, vector<8x8xf32> -> vector<8x8xf32>
    %62 = vector.shape_cast %11 : vector<1x8x8xf32> to vector<8x8xf32>
    %63 = arith.addf %61, %62 : vector<8x8xf32>
    %cst_34 = arith.constant dense<0xFF800000> : vector<8xf32>
    %64 = vector.multi_reduction <maximumf>, %63, %cst_34 [1] : vector<8x8xf32> to vector<8xf32>
    %65 = vector.shape_cast %64 : vector<8xf32> to vector<8x1xf32>
    %66 = vector.broadcast %65 : vector<8x1xf32> to vector<8x8xf32>
    %67 = arith.subf %63, %66 : vector<8x8xf32>
    %68 = math.exp %67 : vector<8x8xf32>
    %cst_35 = arith.constant dense<0.000000e+00> : vector<8xf32>
    %69 = vector.multi_reduction <add>, %68, %cst_35 [1] : vector<8x8xf32> to vector<8xf32>
    %70 = vector.shape_cast %69 : vector<8xf32> to vector<8x1xf32>
    %71 = tpu.reciprocal %70 : vector<8x1xf32> -> vector<8x1xf32>
    %72 = vector.broadcast %71 : vector<8x1xf32> to vector<8x8xf32>
    %73 = arith.mulf %68, %72 : vector<8x8xf32>
    %c0_36 = arith.constant 0 : index
    %c2 = arith.constant 2 : index
    %c0_37 = arith.constant 0 : index
    %c0_38 = arith.constant 0 : index
    %74 = vector.load %arg7[%c0_36, %c2, %c0_37, %c0_38] : memref<1x4x8x8xf32, #tpu.memory_space<vmem>>, vector<1x1x8x8xf32>
    %75 = vector.shape_cast %74 : vector<1x1x8x8xf32> to vector<8x8xf32>
    %76 = vector.shape_cast %73 : vector<8x8xf32> to vector<1x1x8x8xf32>
    tpu.vector_store %arg7[%c0_36, %c2, %c0_37, %c0_38], %76 {strides = array<i32>} : memref<1x4x8x8xf32, #tpu.memory_space<vmem>>, vector<1x1x8x8xf32>,
    %cst_39 = arith.constant dense<0.000000e+00> : vector<8x32xf32>
    %77 = tpu.matmul %73, %60, %cst_39 {dimension_numbers = #tpu.dot_dimension_numbers<[1], [0], [0], [1], [0, 0, 1, 1], [], []>} : vector<8x8xf32>, vector<8x32xf32>, vector<8x32xf32> -> vector<8x32xf32>
    %c0_40 = arith.constant 0 : index
    %c0_41 = arith.constant 0 : index
    %c64 = arith.constant 64 : index
    %78 = vector.load %arg6[%c0_40, %c0_41, %c64] : memref<1x8x128xf32, #tpu.memory_space<vmem>>, vector<1x8x32xf32>
    %79 = vector.shape_cast %78 : vector<1x8x32xf32> to vector<8x32xf32>
    %80 = vector.shape_cast %77 : vector<8x32xf32> to vector<1x8x32xf32>
    tpu.vector_store %arg6[%c0_40, %c0_41, %c64], %80 {strides = array<i32>} : memref<1x8x128xf32, #tpu.memory_space<vmem>>, vector<1x8x32xf32>,
    %81 = vector.extract_strided_slice %3 {offsets = [0, 96], sizes = [8, 32], strides = [1, 1]} : vector<8x128xf32> to vector<8x32xf32>
    %82 = vector.extract_strided_slice %5 {offsets = [0, 96], sizes = [8, 32], strides = [1, 1]} : vector<8x128xf32> to vector<8x32xf32>
    %83 = vector.extract_strided_slice %7 {offsets = [0, 96], sizes = [8, 32], strides = [1, 1]} : vector<8x128xf32> to vector<8x32xf32>
    %cst_42 = arith.constant dense<0.000000e+00> : vector<8x8xf32>
    %84 = tpu.matmul %81, %82, %cst_42 {dimension_numbers = #tpu.dot_dimension_numbers<[1], [1], [0], [0], [0, 0, 1, 0], [], []>} : vector<8x32xf32>, vector<8x32xf32>, vector<8x8xf32> -> vector<8x8xf32>
    %85 = vector.shape_cast %11 : vector<1x8x8xf32> to vector<8x8xf32>
    %86 = arith.addf %84, %85 : vector<8x8xf32>
    %cst_43 = arith.constant dense<0xFF800000> : vector<8xf32>
    %87 = vector.multi_reduction <maximumf>, %86, %cst_43 [1] : vector<8x8xf32> to vector<8xf32>
    %88 = vector.shape_cast %87 : vector<8xf32> to vector<8x1xf32>
    %89 = vector.broadcast %88 : vector<8x1xf32> to vector<8x8xf32>
    %90 = arith.subf %86, %89 : vector<8x8xf32>
    %91 = math.exp %90 : vector<8x8xf32>
    %cst_44 = arith.constant dense<0.000000e+00> : vector<8xf32>
    %92 = vector.multi_reduction <add>, %91, %cst_44 [1] : vector<8x8xf32> to vector<8xf32>
    %93 = vector.shape_cast %92 : vector<8xf32> to vector<8x1xf32>
    %94 = tpu.reciprocal %93 : vector<8x1xf32> -> vector<8x1xf32>
    %95 = vector.broadcast %94 : vector<8x1xf32> to vector<8x8xf32>
    %96 = arith.mulf %91, %95 : vector<8x8xf32>
    %c0_45 = arith.constant 0 : index
    %c3 = arith.constant 3 : index
    %c0_46 = arith.constant 0 : index
    %c0_47 = arith.constant 0 : index
    %97 = vector.load %arg7[%c0_45, %c3, %c0_46, %c0_47] : memref<1x4x8x8xf32, #tpu.memory_space<vmem>>, vector<1x1x8x8xf32>
    %98 = vector.shape_cast %97 : vector<1x1x8x8xf32> to vector<8x8xf32>
    %99 = vector.shape_cast %96 : vector<8x8xf32> to vector<1x1x8x8xf32>
    tpu.vector_store %arg7[%c0_45, %c3, %c0_46, %c0_47], %99 {strides = array<i32>} : memref<1x4x8x8xf32, #tpu.memory_space<vmem>>, vector<1x1x8x8xf32>,
    %cst_48 = arith.constant dense<0.000000e+00> : vector<8x32xf32>
    %100 = tpu.matmul %96, %83, %cst_48 {dimension_numbers = #tpu.dot_dimension_numbers<[1], [0], [0], [1], [0, 0, 1, 1], [], []>} : vector<8x8xf32>, vector<8x32xf32>, vector<8x32xf32> -> vector<8x32xf32>
    %c0_49 = arith.constant 0 : index
    %c0_50 = arith.constant 0 : index
    %c96 = arith.constant 96 : index
    %101 = vector.load %arg6[%c0_49, %c0_50, %c96] : memref<1x8x128xf32, #tpu.memory_space<vmem>>, vector<1x8x32xf32>
    %102 = vector.shape_cast %101 : vector<1x8x32xf32> to vector<8x32xf32>
    %103 = vector.shape_cast %100 : vector<8x32xf32> to vector<1x8x32xf32>
    tpu.vector_store %arg6[%c0_49, %c0_50, %c96], %103 {strides = array<i32>} : memref<1x8x128xf32, #tpu.memory_space<vmem>>, vector<1x8x32xf32>,
    return
  }
  func.func @transform_0(%arg0: i32, %arg1: i32) -> (i32, i32, i32) {
    %c0_i32 = arith.constant 0 : i32
    %c0_i32_0 = arith.constant 0 : i32
    return %arg0, %arg1, %c0_i32 : i32, i32, i32
  }
  func.func @transform_1(%arg0: i32, %arg1: i32) -> (i32, i32, i32) {
    %c0_i32 = arith.constant 0 : i32
    %c1_i32 = arith.constant 1 : i32
    %c0_i32_0 = arith.constant 0 : i32
    return %arg0, %c0_i32, %c1_i32 : i32, i32, i32
  }
  func.func @transform_2(%arg0: i32, %arg1: i32) -> (i32, i32, i32) {
    %c0_i32 = arith.constant 0 : i32
    %c2_i32 = arith.constant 2 : i32
    %c0_i32_0 = arith.constant 0 : i32
    return %arg0, %c0_i32, %c2_i32 : i32, i32, i32
  }
  func.func @transform_3(%arg0: i32, %arg1: i32) -> (i32, i32, i32, i32) {
    %c0_i32 = arith.constant 0 : i32
    %c0_i32_0 = arith.constant 0 : i32
    %c0_i32_1 = arith.constant 0 : i32
    %c0_i32_2 = arith.constant 0 : i32
    return %c0_i32, %c0_i32_0, %arg1, %c0_i32_1 : i32, i32, i32, i32
  }
  func.func @transform_4(%arg0: i32, %arg1: i32) -> (i32, i32, i32) {
    %c0_i32 = arith.constant 0 : i32
    %c0_i32_0 = arith.constant 0 : i32
    return %arg0, %arg1, %c0_i32 : i32, i32, i32
  }
  func.func @transform_5(%arg0: i32, %arg1: i32) -> (i32, i32, i32, i32) {
    %c0_i32 = arith.constant 0 : i32
    %c0_i32_0 = arith.constant 0 : i32
    %c0_i32_1 = arith.constant 0 : i32
    return %arg0, %c0_i32, %arg1, %c0_i32_0 : i32, i32, i32, i32
  }
}

module attributes {stable_mosaic.version = 11 : i64} {
  func.func @_linear_kernel(%arg0: i32, %arg1: i32, %arg2: i32, %arg3: memref<16x128xf32, #tpu.memory_space<vmem>>, %arg4: memref<128x128xf32, #tpu.memory_space<vmem>>, %arg5: memref<1x128xf32, #tpu.memory_space<vmem>>, %arg6: memref<16x128xf32, #tpu.memory_space<vmem>>, %arg7: memref<16x128xf32, #tpu.memory_space<vmem>>) attributes {dimension_semantics = [#tpu.dimension_semantics<parallel>, #tpu.dimension_semantics<parallel>, #tpu.dimension_semantics<arbitrary>], iteration_bounds = array<i64: 1, 1, 1>, scalar_prefetch = 0 : i64, scratch_operands = 1 : i64, tpu.core_type = #tpu.core_type<tc>, window_params = [{transform_indices = @transform_0, window_bounds = array<i64: 16, 128>}, {transform_indices = @transform_1, window_bounds = array<i64: 128, 128>}, {transform_indices = @transform_2, window_bounds = array<i64: 1, 128>}, {transform_indices = @transform_3, window_bounds = array<i64: 16, 128>}]} {
    %c0_i32 = arith.constant 0 : i32
    %0 = arith.cmpi eq, %arg2, %c0_i32 : i32
    %1 = arith.extui %0 : i1 to i32
    %c0_i32_0 = arith.constant 0 : i32
    %2 = arith.cmpi ne, %1, %c0_i32_0 : i32
    scf.if %2 {
      %cst_10 = arith.constant 0.000000e+00 : f32
      %12 = vector.broadcast %cst_10 : f32 to vector<16x128xf32>
      %c0_11 = arith.constant 0 : index
      %c0_12 = arith.constant 0 : index
      %13 = vector.load %arg7[%c0_11, %c0_12] : memref<16x128xf32, #tpu.memory_space<vmem>>, vector<16x128xf32>
      tpu.vector_store %arg7[%c0_11, %c0_12], %12 {strides = array<i32>} : memref<16x128xf32, #tpu.memory_space<vmem>>, vector<16x128xf32>,
    } else {
    }
    %c0 = arith.constant 0 : index
    %c0_1 = arith.constant 0 : index
    %3 = vector.load %arg7[%c0, %c0_1] : memref<16x128xf32, #tpu.memory_space<vmem>>, vector<16x128xf32>
    %c0_2 = arith.constant 0 : index
    %c0_3 = arith.constant 0 : index
    %4 = vector.load %arg3[%c0_2, %c0_3] : memref<16x128xf32, #tpu.memory_space<vmem>>, vector<16x128xf32>
    %c0_4 = arith.constant 0 : index
    %c0_5 = arith.constant 0 : index
    %5 = vector.load %arg4[%c0_4, %c0_5] : memref<128x128xf32, #tpu.memory_space<vmem>>, vector<128x128xf32>
    %cst = arith.constant dense<0.000000e+00> : vector<16x128xf32>
    %6 = tpu.matmul %4, %5, %cst {dimension_numbers = #tpu.dot_dimension_numbers<[1], [1], [0], [0], [0, 0, 1, 0], [], []>} : vector<16x128xf32>, vector<128x128xf32>, vector<16x128xf32> -> vector<16x128xf32>
    %7 = arith.addf %3, %6 : vector<16x128xf32>
    %c0_6 = arith.constant 0 : index
    %c0_7 = arith.constant 0 : index
    %8 = vector.load %arg7[%c0_6, %c0_7] : memref<16x128xf32, #tpu.memory_space<vmem>>, vector<16x128xf32>
    tpu.vector_store %arg7[%c0_6, %c0_7], %7 {strides = array<i32>} : memref<16x128xf32, #tpu.memory_space<vmem>>, vector<16x128xf32>,
    %c0_i32_8 = arith.constant 0 : i32
    %9 = arith.cmpi eq, %arg2, %c0_i32_8 : i32
    %10 = arith.extui %9 : i1 to i32
    %c0_i32_9 = arith.constant 0 : i32
    %11 = arith.cmpi ne, %10, %c0_i32_9 : i32
    scf.if %11 {
      %c0_10 = arith.constant 0 : index
      %c0_11 = arith.constant 0 : index
      %12 = vector.load %arg7[%c0_10, %c0_11] : memref<16x128xf32, #tpu.memory_space<vmem>>, vector<16x128xf32>
      %c0_12 = arith.constant 0 : index
      %c0_13 = arith.constant 0 : index
      %13 = vector.load %arg5[%c0_12, %c0_13] : memref<1x128xf32, #tpu.memory_space<vmem>>, vector<1x128xf32>
      %14 = vector.broadcast %13 : vector<1x128xf32> to vector<16x128xf32>
      %15 = arith.addf %12, %14 : vector<16x128xf32>
      %c0_14 = arith.constant 0 : index
      %c0_15 = arith.constant 0 : index
      %16 = vector.load %arg6[%c0_14, %c0_15] : memref<16x128xf32, #tpu.memory_space<vmem>>, vector<16x128xf32>
      tpu.vector_store %arg6[%c0_14, %c0_15], %15 {strides = array<i32>} : memref<16x128xf32, #tpu.memory_space<vmem>>, vector<16x128xf32>,
    } else {
    }
    return
  }
  func.func @transform_0(%arg0: i32, %arg1: i32, %arg2: i32) -> (i32, i32) {
    %c0_i32 = arith.constant 0 : i32
    return %arg0, %arg2 : i32, i32
  }
  func.func @transform_1(%arg0: i32, %arg1: i32, %arg2: i32) -> (i32, i32) {
    %c0_i32 = arith.constant 0 : i32
    return %arg1, %arg2 : i32, i32
  }
  func.func @transform_2(%arg0: i32, %arg1: i32, %arg2: i32) -> (i32, i32) {
    %c0_i32 = arith.constant 0 : i32
    %c0_i32_0 = arith.constant 0 : i32
    return %c0_i32, %arg1 : i32, i32
  }
  func.func @transform_3(%arg0: i32, %arg1: i32, %arg2: i32) -> (i32, i32) {
    %c0_i32 = arith.constant 0 : i32
    return %arg0, %arg1 : i32, i32
  }
}

</mosaic_0001>

<llo_original>
// kernel: _mha_self.5
$region0: #{_mha_self.5}
  #allocation0 [shape = 'u32[]', space=smem, size = 0x4, offset = 0x4, fixed_abs, tag = 'smem constant byte address 0x4 - core index']
  #allocation1 [shape = 'u32[144,128]{1,0:T(1,128)}', space=vmem, size = 0x12000, scoped, tag = 'internal scratch']
  #allocation2 [shape = 'f32[16,128]{1,0:T(8,128)}', space=vmem, size = 0x2000, scoped, tag = 'scratch operand']
  %s0 = inlined_call_operand.vmem [shape: f32[16,128], index: 0, kind: input, shape index: {}]
  %s1 = inlined_call_operand.vmem [shape: f32[128,128], index: 1, kind: input, shape index: {}]
  %s2 = inlined_call_operand.vmem [shape: f32[1,128], index: 2, kind: input, shape index: {}]
  %s3 = inlined_call_operand.hbm [shape: f32[16,128], index: 3, kind: output, shape index: {}]
  %s4 = sld [smem:[#allocation0]]
  $region30: #{_mha_self.5} parent=0
    _
  %s6 = ssub.s32 1, %s4
  %s7 = scalar_select 0, %s6, %s4
  $region1: #{_mha_self.5} parent=0
    #allocation3 [shape = 'u8[8192]{0}', space=vmem, size = 0x2000, scoped, tag = 'output window, operand 0, single buffered']
    #allocation4 [shape = 's32[1]{0}', space=sflag, size = 0x4, scoped, tag = 'scoped memory for _mha_self.5']
    %8 = vsyncpa [#allocation4], 0
    // Predicated region
    $region2: #{_mha_self.5} parent=1 // pred_check
      _
    $region3: #{_mha_self.5} parent=1 // pred_check_branch
      %10 = sbr.rel (0) target = $region5
    $region4: #{_mha_self.5} parent=1 // pred_region
      _
    $region5: #{_mha_self.5} parent=1 // pred_fallthru
      _
    // Predicated region
    $region6: #{_mha_self.5} parent=1 // pred_check
      _
    $region7: #{_mha_self.5} parent=1 // pred_check_branch
      %12 = sbr.rel (0) target = $region9
    $region8: #{_mha_self.5} parent=1 // pred_region
      _
    $region9: #{_mha_self.5} parent=1 // pred_fallthru
      _
    // Predicated region
    $region10: #{_mha_self.5} parent=1 // pred_check
      _
    $region11: #{_mha_self.5} parent=1 // pred_check_branch
      %14 = sbr.rel (0) target = $region13
    $region12: #{_mha_self.5} parent=1 // pred_region
      _
    $region13: #{_mha_self.5} parent=1 // pred_fallthru
      _
    %p15 = scmp.eq.s32.totalorder 0, 0
    // Predicated region
    $region14: #{_mha_self.5} parent=1 // pred_check
      %p16 = pneg %p15
    $region15: #{_mha_self.5} parent=1 // pred_check_branch
      %18 = sbr.rel (%p16) target = $region17
    $region16: #{_mha_self.5} parent=1 // pred_region
      %19 = vst [vmem:[#allocation2] sm:$0xff] 0.0
      %20 = vst [vmem:[#allocation2 + $0x8] sm:$0xff] 0.0
    $region17: #{_mha_self.5} parent=1 // pred_fallthru
      _
    %v21 = vld [vmem:[#allocation2] sm:$0xff]
    %v22 = vld [vmem:[#allocation2 + $0x8] sm:$0xff]
    %v23 = vld [vmem:[%s0] sm:$0xff]
    %v24 = vld [vmem:[%s0 + $0x8] sm:$0xff]
    %v25 = vld [vmem:[%s1] sm:$0xff]
    %v26 = vld [vmem:[%s1 + $0x8] sm:$0xff]
    %v27 = vld [vmem:[%s1 + $0x10] sm:$0xff]
    %v28 = vld [vmem:[%s1 + $0x18] sm:$0xff]
    %v29 = vld [vmem:[%s1 + $0x20] sm:$0xff]
    %v30 = vld [vmem:[%s1 + $0x28] sm:$0xff]
    %v31 = vld [vmem:[%s1 + $0x30] sm:$0xff]
    %v32 = vld [vmem:[%s1 + $0x38] sm:$0xff]
    %v33 = vld [vmem:[%s1 + $0x40] sm:$0xff]
    %v34 = vld [vmem:[%s1 + $0x48] sm:$0xff]
    %v35 = vld [vmem:[%s1 + $0x50] sm:$0xff]
    %v36 = vld [vmem:[%s1 + $0x58] sm:$0xff]
    %v37 = vld [vmem:[%s1 + $0x60] sm:$0xff]
    %v38 = vld [vmem:[%s1 + $0x68] sm:$0xff]
    %v39 = vld [vmem:[%s1 + $0x70] sm:$0xff]
    %v40 = vld [vmem:[%s1 + $0x78] sm:$0xff]
    %41 = vmatprep.subr.mxu0 0.0
    %42 = vmatpush1.xpose.msra.mxu0 %v25
    %43 = vmatprep.subr.mxu0 0.0
    %44 = vmatpush1.xpose.msra.mxu0 %v26
    %45 = vmatprep.subr.mxu0 0.0
    %46 = vmatpush1.xpose.msra.mxu0 %v27
    %47 = vmatprep.subr.mxu0 0.0
    %48 = vmatpush1.xpose.msra.mxu0 %v28
    %49 = vmatprep.subr.mxu0 0.0
    %50 = vmatpush1.xpose.msra.mxu0 %v29
    %51 = vmatprep.subr.mxu0 0.0
    %52 = vmatpush1.xpose.msra.mxu0 %v30
    %53 = vmatprep.subr.mxu0 0.0
    %54 = vmatpush1.xpose.msra.mxu0 %v31
    %55 = vmatprep.subr.mxu0 0.0
    %56 = vmatpush1.xpose.msra.mxu0 %v32
    %57 = vmatprep.subr.mxu0 0.0
    %58 = vmatpush1.xpose.msra.mxu0 %v33
    %59 = vmatprep.subr.mxu0 0.0
    %60 = vmatpush1.xpose.msra.mxu0 %v34
    %61 = vmatprep.subr.mxu0 0.0
    %62 = vmatpush1.xpose.msra.mxu0 %v35
    %63 = vmatprep.subr.mxu0 0.0
    %64 = vmatpush1.xpose.msra.mxu0 %v36
    %65 = vmatprep.subr.mxu0 0.0
    %66 = vmatpush1.xpose.msra.mxu0 %v37
    %67 = vmatprep.subr.mxu0 0.0
    %68 = vmatpush1.xpose.msra.mxu0 %v38
    %69 = vmatprep.subr.mxu0 0.0
    %70 = vmatpush1.xpose.msra.mxu0 %v39
    %71 = vmatprep.subr.mxu0 0.0
    %72 = vmatpush1.xpose.msra.mxu0 %v40
    %73 = vmatprep.subr.mxu0 0.0
    %74 = vmatpush1.xpose.msra.mxu0 0.0
    %75 = vmatprep.subr.mxu0 0.0
    %76 = vmatpush1.xpose.msra.mxu0 0.0
    %77 = vmatprep.subr.mxu0 0.0
    %78 = vmatpush1.xpose.msra.mxu0 0.0
    %79 = vmatprep.subr.mxu0 0.0
    %80 = vmatpush1.xpose.msra.mxu0 0.0
    %81 = vmatprep.subr.mxu0 0.0
    %82 = vmatpush1.xpose.msra.mxu0 0.0
    %83 = vmatprep.subr.mxu0 0.0
    %84 = vmatpush1.xpose.msra.mxu0 0.0
    %85 = vmatprep.subr.mxu0 0.0
    %86 = vmatpush1.xpose.msra.mxu0 0.0
    %87 = vmatprep.subr.mxu0 0.0
    %88 = vmatpush1.xpose.msra.mxu0 0.0
    %89 = vmatprep.subr.mxu0 0.0
    %90 = vmatpush1.xpose.msra.mxu0 0.0
    %91 = vmatprep.subr.mxu0 0.0
    %92 = vmatpush1.xpose.msra.mxu0 0.0
    %93 = vmatprep.subr.mxu0 0.0
    %94 = vmatpush1.xpose.msra.mxu0 0.0
    %95 = vmatprep.subr.mxu0 0.0
    %96 = vmatpush1.xpose.msra.mxu0 0.0
    %97 = vmatprep.subr.mxu0 0.0
    %98 = vmatpush1.xpose.msra.mxu0 0.0
    %99 = vmatprep.subr.mxu0 0.0
    %100 = vmatpush1.xpose.msra.mxu0 0.0
    %101 = vmatprep.subr.mxu0 0.0
    %102 = vmatpush1.xpose.msra.mxu0 0.0
    %103 = vmatprep.subr.mxu0 0.0
    %104 = vmatpush1.xpose.msra.mxu0 0.0
    %105 = vmatprep.mubr.f32.mxu0 0.0
    %106 = vmatmul.mubr.f32.gmra.mrb[0].mxu0 %v23
    %v107 = vpop.f32.mrb[0].mxu0
    %v108 = vadd.f32 0.0, %v107
    %v109 = vpop.f32.mrb[0].mxu0
    %110 = vmatprep.mubr.f32.mxu0 0.0
    %111 = vmatmul.mubr.f32.gmra.mrb[0].mxu0 %v24
    %v112 = vpop.f32.mrb[0].mxu0
    %v113 = vadd.f32 0.0, %v112
    %v114 = vpop.f32.mrb[0].mxu0
    %115 = vdwg.mxu0
    %v116 = vadd.f32 %v21, %v108
    %v117 = vadd.f32 %v22, %v113
    %118 = vst [vmem:[#allocation2] sm:$0xff] %v116
    %119 = vst [vmem:[#allocation2 + $0x8] sm:$0xff] %v117
    // Predicated region
    $region18: #{_mha_self.5} parent=1 // pred_check
      %p120 = pneg %p15
    $region19: #{_mha_self.5} parent=1 // pred_check_branch
      %122 = sbr.rel (%p120) target = $region21
    $region20: #{_mha_self.5} parent=1 // pred_region
      %v123 = vld [vmem:[#allocation2] sm:$0xff]
      %v124 = vld [vmem:[#allocation2 + $0x8] sm:$0xff]
      %v125 = vld [vmem:[%s2] sm:$0x1]
      %v127 = vlaneseq
      %v128 = vshrl.u32 %v127, 7
      %v129 = vsub.s32 0, %v128
      %v130 = vrot.slane %v125, %v129
      %v132 = vadd.f32 %v123, %v130
      %v133 = vadd.f32 %v124, %v130
      %134 = vst [vmem:[#allocation3] sm:$0xff] %v132
      %135 = vst [vmem:[#allocation3 + $0x8] sm:$0xff] %v133
    $region21: #{_mha_self.5} parent=1 // pred_fallthru
      _
    // Predicated region
    $region22: #{_mha_self.5} parent=1 // pred_check
      _
    $region23: #{_mha_self.5} parent=1 // pred_check_branch
      %137 = sbr.rel (0) target = $region25
    $region24: #{_mha_self.5} parent=1 // pred_region
      %s139 = ssub.s32 256, 256
      %140 = vsyncadd [#allocation4], %s139
      %s141 = sshll.u32 [#allocation3], 4
      %s142 = int_to_ptr.vmem [resolvable:$true] %s141
      %147 = dma.vmem_to_hbm [thread:$0]  %s142, 256, %s3, [#allocation4], 128, 128, 8
    $region25: #{_mha_self.5} parent=1 // pred_fallthru
      _
    // Predicated region
    $region26: #{_mha_self.5} parent=1 // pred_check
      _
    $region27: #{_mha_self.5} parent=1 // pred_check_branch
      %149 = sbr.rel (0) target = $region29
    $region28: #{_mha_self.5} parent=1 // pred_region
      %150 = dma.done [#allocation4], 256
    $region29: #{_mha_self.5} parent=1 // pred_fallthru
      _
    %151 = vsyncpa [#allocation4], 1

// kernel: _mha_self.3
$region0: #{_mha_self.3}
  #allocation0 [shape = 'u32[]', space=smem, size = 0x4, offset = 0x4, fixed_abs, tag = 'smem constant byte address 0x4 - core index']
  #allocation1 [shape = 'u32[144,128]{1,0:T(1,128)}', space=vmem, size = 0x12000, scoped, tag = 'internal scratch']
  #allocation2 [shape = 'f32[16,128]{1,0:T(8,128)}', space=vmem, size = 0x2000, scoped, tag = 'scratch operand']
  %s0 = inlined_call_operand.vmem [shape: f32[16,128], index: 0, kind: input, shape index: {}]
  %s1 = inlined_call_operand.vmem [shape: f32[384,128], index: 1, kind: input, shape index: {}]
  %s2 = inlined_call_operand.vmem [shape: f32[1,384], index: 2, kind: input, shape index: {}]
  %s3 = inlined_call_operand.vmem [shape: f32[16,384], index: 3, kind: output, shape index: {}]
  %s4 = sld [smem:[#allocation0]]
  $region87: #{_mha_self.3} parent=0
    _
  %s6 = ssub.s32 1, %s4
  %s7 = scalar_select 0, %s6, %s4
  $region1: #{_mha_self.3} parent=0
    #allocation3 [shape = 'u8[16384]{0}', space=vmem, size = 0x4000, scoped, tag = 'output window, operand 0']
    loop: start=0, step=1, limit=5
    $region2: #{_mha_self.3} parent=1 // loop_pre_header
      _
    $region3: #{_mha_self.3} parent=1 // loop_header
      %s9 = sphi 0, %s13
      %p10 = scmp.ge.s32.totalorder %s9, 5
      %s16 = sphi 0, %s35
      %s17 = sphi 0, %s31
      %s18 = sphi 0, %s27
      %s19 = sphi 0, %s16
      %s20 = sphi 0, %s17
      %s21 = sphi 0, %s18
      %s22 = sphi 0, %s19
      %s23 = sphi 0, %s20
      %s24 = sphi 0, %s21
      %s40 = sphi 0, %s42
      %s43 = sphi 0, %s40
      %s44 = sphi 0, %s43
      %s60 = sphi 0, %s44
      %s68 = sphi 0, %s70
      %s71 = sphi 0, %s68
      %s72 = sphi 0, %s71
      %s88 = sphi 0, %s72
      %s94 = sphi 0, %s96
      %s97 = sphi 0, %s94
      %s98 = sphi 0, %s97
      %s114 = sphi 0, %s98
      %s122 = sphi 0, %s124
      %s125 = sphi 0, %s122
      %s126 = sphi 0, %s125
      %s142 = sphi 0, %s126
    $region4: #{_mha_self.3} parent=1 // loop_header_branch
      %12 = sbr.rel (%p10) target = $region8
    $region5: #{_mha_self.3} parent=1 // loop_body
      %s14 = ssub.s32 %s9, 1
      %s15 = ssub.s32 %s9, 2
      %s25 = sadd.s32 1, %s18
      %p26 = scmp.ge.s32.totalorder %s25, 1
      %s27 = scalar_select %p26, 0, %s25
      %s28 = sadd.s32 1, %s17
      %s29 = scalar_select %p26, %s28, %s17
      %p30 = scmp.ge.s32.totalorder %s29, 3
      %s31 = scalar_select %p30, 0, %s29
      %s32 = sadd.s32 1, %s16
      %s33 = scalar_select %p30, %s32, %s16
      %p34 = scmp.ge.s32.totalorder %s33, 1
      %s35 = scalar_select %p34, 0, %s33
      %s36 = ssub.s32 %s16, %s35
      %s37 = ssub.s32 %s18, %s27
      %s38 = sor.u32 %s36, %s37
      %p39 = scmp.eq.s32.totalorder %s38, 0
      %s41 = sadd.s32 %s40, 1
      %s42 = scalar_select %p39, %s40, %s41
      %p45 = pneg %p39
      %p46 = scmp.eq.s32.totalorder %s9, 2
      %p47 = por %p45, %p46
      %p48 = scmp.ne.s32.totalorder %s40, %s43
      %p49 = scmp.eq.s32.totalorder %s9, 0
      %p50 = por %p48, %p49
      %p51 = scmp.ne.s32.totalorder %s40, %s43
      %p52 = scmp.eq.s32.totalorder %s14, 2
      %p53 = por %p51, %p52
      %p54 = scmp.ne.s32.totalorder %s43, %s44
      %p55 = scmp.eq.s32.totalorder %s14, 0
      %p56 = por %p54, %p55
      %p57 = scmp.ne.s32.totalorder %s43, %s44
      %p58 = scmp.eq.s32.totalorder %s15, 2
      %p59 = por %p57, %p58
      %p61 = scmp.ne.s32.totalorder %s44, %s60
      %p62 = scmp.eq.s32.totalorder %s15, 0
      %p63 = por %p61, %p62
      %s64 = ssub.s32 %s17, %s31
      %s65 = ssub.s32 %s18, %s27
      %s66 = sor.u32 %s64, %s65
      %p67 = scmp.eq.s32.totalorder %s66, 0
      %s69 = sadd.s32 %s68, 1
      %s70 = scalar_select %p67, %s68, %s69
      %p73 = pneg %p67
      %p74 = scmp.eq.s32.totalorder %s9, 2
      %p75 = por %p73, %p74
      %p76 = scmp.ne.s32.totalorder %s68, %s71
      %p77 = scmp.eq.s32.totalorder %s9, 0
      %p78 = por %p76, %p77
      %p79 = scmp.ne.s32.totalorder %s68, %s71
      %p80 = scmp.eq.s32.totalorder %s14, 2
      %p81 = por %p79, %p80
      %p82 = scmp.ne.s32.totalorder %s71, %s72
      %p83 = scmp.eq.s32.totalorder %s14, 0
      %p84 = por %p82, %p83
      %p85 = scmp.ne.s32.totalorder %s71, %s72
      %p86 = scmp.eq.s32.totalorder %s15, 2
      %p87 = por %p85, %p86
      %p89 = scmp.ne.s32.totalorder %s72, %s88
      %p90 = scmp.eq.s32.totalorder %s15, 0
      %p91 = por %p89, %p90
      %s92 = ssub.s32 %s17, %s31
      %p93 = scmp.eq.s32.totalorder %s92, 0
      %s95 = sadd.s32 %s94, 1
      %s96 = scalar_select %p93, %s94, %s95
      %p99 = pneg %p93
      %p100 = scmp.eq.s32.totalorder %s9, 2
      %p101 = por %p99, %p100
      %p102 = scmp.ne.s32.totalorder %s94, %s97
      %p103 = scmp.eq.s32.totalorder %s9, 0
      %p104 = por %p102, %p103
      %p105 = scmp.ne.s32.totalorder %s94, %s97
      %p106 = scmp.eq.s32.totalorder %s14, 2
      %p107 = por %p105, %p106
      %p108 = scmp.ne.s32.totalorder %s97, %s98
      %p109 = scmp.eq.s32.totalorder %s14, 0
      %p110 = por %p108, %p109
      %p111 = scmp.ne.s32.totalorder %s97, %s98
      %p112 = scmp.eq.s32.totalorder %s15, 2
      %p113 = por %p111, %p112
      %p115 = scmp.ne.s32.totalorder %s98, %s114
      %p116 = scmp.eq.s32.totalorder %s15, 0
      %p117 = por %p115, %p116
      %s118 = ssub.s32 %s16, %s35
      %s119 = ssub.s32 %s17, %s31
      %s120 = sor.u32 %s118, %s119
      %p121 = scmp.eq.s32.totalorder %s120, 0
      %s123 = sadd.s32 %s122, 1
      %s124 = scalar_select %p121, %s122, %s123
      %p127 = pneg %p121
      %p128 = scmp.eq.s32.totalorder %s9, 2
      %p129 = por %p127, %p128
      %p130 = scmp.ne.s32.totalorder %s122, %s125
      %p131 = scmp.eq.s32.totalorder %s9, 0
      %p132 = por %p130, %p131
      %p133 = scmp.ne.s32.totalorder %s122, %s125
      %p134 = scmp.eq.s32.totalorder %s14, 2
      %p135 = por %p133, %p134
      %p136 = scmp.ne.s32.totalorder %s125, %s126
      %p137 = scmp.eq.s32.totalorder %s14, 0
      %p138 = por %p136, %p137
      %p139 = scmp.ne.s32.totalorder %s125, %s126
      %p140 = scmp.eq.s32.totalorder %s15, 2
      %p141 = por %p139, %p140
      %p143 = scmp.ne.s32.totalorder %s126, %s142
      %p144 = scmp.eq.s32.totalorder %s15, 0
      %p145 = por %p143, %p144
      %p146 = scmp.le.s32.totalorder 1, %s9
      %p147 = scmp.lt.s32.totalorder %s9, 4
      %p148 = pnand %p146, %p147
      %p149 = pneg %p148
      // Predicated region
      $region9: #{_mha_self.3} parent=5 // pred_check
        _
      $region10: #{_mha_self.3} parent=5 // pred_check_branch
        %151 = sbr.rel (%p148) target = $region12
      $region11: #{_mha_self.3} parent=5 // pred_region
        %s152 = ssub.s32 %s9, 1
        // Predicated region
        $region13: #{_mha_self.3} parent=11 // pred_check
          %p153 = pneg %p56
        $region14: #{_mha_self.3} parent=11 // pred_check_branch
          %155 = sbr.rel (%p153) target = $region16
        $region15: #{_mha_self.3} parent=11 // pred_region
          %s156 = smul.u32 2, %s19
          %p157 = scmp.lt.s32.totalorder %s156, 1
          %s158 = scalar_select %p157, %s156, 1
          %p159 = scmp.lt.s32.totalorder %s21, 0
          %s160 = scalar_select %p159, %s21, 0
          %s161 = sadd.s32 %s160, %s158
          %s162 = smul.addr %s161, 8
          %s163 = scalar_lea.vmem %s0, %s162
          %s164 = smul.u32 2, %s19
        $region16: #{_mha_self.3} parent=11 // pred_fallthru
          _
      $region12: #{_mha_self.3} parent=5 // pred_fallthru
        _
      %p165 = scmp.lt.s32.totalorder %s9, 3
      // Predicated region
      $region17: #{_mha_self.3} parent=5 // pred_check
        %p166 = pneg %p165
      $region18: #{_mha_self.3} parent=5 // pred_check_branch
        %168 = sbr.rel (%p166) target = $region20
      $region19: #{_mha_self.3} parent=5 // pred_region
        // Predicated region
        $region21: #{_mha_self.3} parent=19 // pred_check
          %p169 = pneg %p78
        $region22: #{_mha_self.3} parent=19 // pred_check_branch
          %171 = sbr.rel (%p169) target = $region24
        $region23: #{_mha_self.3} parent=19 // pred_region
          %s172 = smul.u32 16, %s17
          %p173 = scmp.lt.s32.totalorder %s172, 47
          %s174 = scalar_select %p173, %s172, 47
          %p175 = scmp.lt.s32.totalorder %s18, 0
          %s176 = scalar_select %p175, %s18, 0
          %s177 = sadd.s32 %s176, %s174
          %s178 = smul.addr %s177, 8
          %s179 = scalar_lea.vmem %s1, %s178
          %s180 = smul.u32 16, %s17
        $region24: #{_mha_self.3} parent=19 // pred_fallthru
          _
        // Predicated region
        $region25: #{_mha_self.3} parent=19 // pred_check
          %p181 = pneg %p104
        $region26: #{_mha_self.3} parent=19 // pred_check_branch
          %183 = sbr.rel (%p181) target = $region28
        $region27: #{_mha_self.3} parent=19 // pred_region
          %p184 = scmp.lt.s32.totalorder %s17, 2
          %s185 = scalar_select %p184, %s17, 2
          %s186 = scalar_lea.vmem %s2, %s185
        $region28: #{_mha_self.3} parent=19 // pred_fallthru
          _
      $region20: #{_mha_self.3} parent=5 // pred_fallthru
        _
      %p187 = scmp.le.s32.totalorder 1, %s9
      %p188 = scmp.lt.s32.totalorder %s9, 4
      %p189 = pnand %p187, %p188
      %p190 = pneg %p189
      // Predicated region
      $region29: #{_mha_self.3} parent=5 // pred_check
        _
      $region30: #{_mha_self.3} parent=5 // pred_check_branch
        %192 = sbr.rel (%p189) target = $region32
      $region31: #{_mha_self.3} parent=5 // pred_region
        %s193 = ssub.s32 %s9, 1
        %s194 = smul.u32 2, %s19
        %p195 = scmp.lt.s32.totalorder %s194, 1
        %s196 = scalar_select %p195, %s194, 1
        %p197 = scmp.lt.s32.totalorder %s21, 0
        %s198 = scalar_select %p197, %s21, 0
        %s199 = sadd.s32 %s198, %s196
        %s200 = smul.addr %s199, 8
        %s201 = scalar_lea.vmem %s0, %s200
        %p202 = pneg %p56
        %p203 = pneg %p53
        %s204 = smul.u32 16, %s20
        %p205 = scmp.lt.s32.totalorder %s204, 47
        %s206 = scalar_select %p205, %s204, 47
        %p207 = scmp.lt.s32.totalorder %s21, 0
        %s208 = scalar_select %p207, %s21, 0
        %s209 = sadd.s32 %s208, %s206
        %s210 = smul.addr %s209, 8
        %s211 = scalar_lea.vmem %s1, %s210
        %p212 = pneg %p84
        %p213 = pneg %p81
        %p214 = scmp.lt.s32.totalorder %s20, 2
        %s215 = scalar_select %p214, %s20, 2
        %s216 = scalar_lea.vmem %s2, %s215
        %p217 = pneg %p110
        %p218 = pneg %p107
        %p219 = pneg %p138
        %p220 = pneg %p135
        %s221 = sand.u32 %s125, 1
        %s222 = sand.u32 %s125, 1
        %s223 = smul.addr %s222, 16
        %s224 = scalar_lea.vmem [#allocation3], %s223
        %s225 = smul.u32 2, %s19
        %p226 = scmp.lt.s32.totalorder %s225, 1
        %s227 = scalar_select %p226, %s225, 1
        %p228 = scmp.lt.s32.totalorder %s21, 0
        %s229 = scalar_select %p228, %s21, 0
        %s230 = sadd.s32 %s229, %s227
        %s231 = smul.addr %s230, 8
        %s232 = scalar_lea.vmem %s0, %s231
        %s233 = smul.u32 2, %s19
        %s234 = smul.u32 16, %s20
        %p235 = scmp.lt.s32.totalorder %s234, 47
        %s236 = scalar_select %p235, %s234, 47
        %p237 = scmp.lt.s32.totalorder %s21, 0
        %s238 = scalar_select %p237, %s21, 0
        %s239 = sadd.s32 %s238, %s236
        %s240 = smul.addr %s239, 8
        %s241 = scalar_lea.vmem %s1, %s240
        %s242 = smul.u32 16, %s20
        %p243 = scmp.lt.s32.totalorder %s20, 2
        %s244 = scalar_select %p243, %s20, 2
        %s245 = scalar_lea.vmem %s2, %s244
        %s246 = smul.u32 2, %s19
        %p247 = scmp.eq.s32.totalorder %s21, 0
        // Predicated region
        $region33: #{_mha_self.3} parent=31 // pred_check
          %p248 = pneg %p247
        $region34: #{_mha_self.3} parent=31 // pred_check_branch
          %250 = sbr.rel (%p248) target = $region36
        $region35: #{_mha_self.3} parent=31 // pred_region
          %251 = vst [vmem:[#allocation2] sm:$0xff] 0.0
          %252 = vst [vmem:[#allocation2 + $0x8] sm:$0xff] 0.0
        $region36: #{_mha_self.3} parent=31 // pred_fallthru
          _
        %v253 = vld [vmem:[#allocation2] sm:$0xff]
        %v254 = vld [vmem:[#allocation2 + $0x8] sm:$0xff]
        %v255 = vld [vmem:[%s232] sm:$0xff]
        %v256 = vld [vmem:[%s232 + $0x8] sm:$0xff]
        %v257 = vld [vmem:[%s241] sm:$0xff]
        %v258 = vld [vmem:[%s241 + $0x8] sm:$0xff]
        %v259 = vld [vmem:[%s241 + $0x10] sm:$0xff]
        %v260 = vld [vmem:[%s241 + $0x18] sm:$0xff]
        %v261 = vld [vmem:[%s241 + $0x20] sm:$0xff]
        %v262 = vld [vmem:[%s241 + $0x28] sm:$0xff]
        %v263 = vld [vmem:[%s241 + $0x30] sm:$0xff]
        %v264 = vld [vmem:[%s241 + $0x38] sm:$0xff]
        %v265 = vld [vmem:[%s241 + $0x40] sm:$0xff]
        %v266 = vld [vmem:[%s241 + $0x48] sm:$0xff]
        %v267 = vld [vmem:[%s241 + $0x50] sm:$0xff]
        %v268 = vld [vmem:[%s241 + $0x58] sm:$0xff]
        %v269 = vld [vmem:[%s241 + $0x60] sm:$0xff]
        %v270 = vld [vmem:[%s241 + $0x68] sm:$0xff]
        %v271 = vld [vmem:[%s241 + $0x70] sm:$0xff]
        %v272 = vld [vmem:[%s241 + $0x78] sm:$0xff]
        %273 = vmatprep.subr.mxu0 0.0
        %274 = vmatpush1.xpose.msra.mxu0 %v257
        %275 = vmatprep.subr.mxu0 0.0
        %276 = vmatpush1.xpose.msra.mxu0 %v258
        %277 = vmatprep.subr.mxu0 0.0
        %278 = vmatpush1.xpose.msra.mxu0 %v259
        %279 = vmatprep.subr.mxu0 0.0
        %280 = vmatpush1.xpose.msra.mxu0 %v260
        %281 = vmatprep.subr.mxu0 0.0
        %282 = vmatpush1.xpose.msra.mxu0 %v261
        %283 = vmatprep.subr.mxu0 0.0
        %284 = vmatpush1.xpose.msra.mxu0 %v262
        %285 = vmatprep.subr.mxu0 0.0
        %286 = vmatpush1.xpose.msra.mxu0 %v263
        %287 = vmatprep.subr.mxu0 0.0
        %288 = vmatpush1.xpose.msra.mxu0 %v264
        %289 = vmatprep.subr.mxu0 0.0
        %290 = vmatpush1.xpose.msra.mxu0 %v265
        %291 = vmatprep.subr.mxu0 0.0
        %292 = vmatpush1.xpose.msra.mxu0 %v266
        %293 = vmatprep.subr.mxu0 0.0
        %294 = vmatpush1.xpose.msra.mxu0 %v267
        %295 = vmatprep.subr.mxu0 0.0
        %296 = vmatpush1.xpose.msra.mxu0 %v268
        %297 = vmatprep.subr.mxu0 0.0
        %298 = vmatpush1.xpose.msra.mxu0 %v269
        %299 = vmatprep.subr.mxu0 0.0
        %300 = vmatpush1.xpose.msra.mxu0 %v270
        %301 = vmatprep.subr.mxu0 0.0
        %302 = vmatpush1.xpose.msra.mxu0 %v271
        %303 = vmatprep.subr.mxu0 0.0
        %304 = vmatpush1.xpose.msra.mxu0 %v272
        %305 = vmatprep.subr.mxu0 0.0
        %306 = vmatpush1.xpose.msra.mxu0 0.0
        %307 = vmatprep.subr.mxu0 0.0
        %308 = vmatpush1.xpose.msra.mxu0 0.0
        %309 = vmatprep.subr.mxu0 0.0
        %310 = vmatpush1.xpose.msra.mxu0 0.0
        %311 = vmatprep.subr.mxu0 0.0
        %312 = vmatpush1.xpose.msra.mxu0 0.0
        %313 = vmatprep.subr.mxu0 0.0
        %314 = vmatpush1.xpose.msra.mxu0 0.0
        %315 = vmatprep.subr.mxu0 0.0
        %316 = vmatpush1.xpose.msra.mxu0 0.0
        %317 = vmatprep.subr.mxu0 0.0
        %318 = vmatpush1.xpose.msra.mxu0 0.0
        %319 = vmatprep.subr.mxu0 0.0
        %320 = vmatpush1.xpose.msra.mxu0 0.0
        %321 = vmatprep.subr.mxu0 0.0
        %322 = vmatpush1.xpose.msra.mxu0 0.0
        %323 = vmatprep.subr.mxu0 0.0
        %324 = vmatpush1.xpose.msra.mxu0 0.0
        %325 = vmatprep.subr.mxu0 0.0
        %326 = vmatpush1.xpose.msra.mxu0 0.0
        %327 = vmatprep.subr.mxu0 0.0
        %328 = vmatpush1.xpose.msra.mxu0 0.0
        %329 = vmatprep.subr.mxu0 0.0
        %330 = vmatpush1.xpose.msra.mxu0 0.0
        %331 = vmatprep.subr.mxu0 0.0
        %332 = vmatpush1.xpose.msra.mxu0 0.0
        %333 = vmatprep.subr.mxu0 0.0
        %334 = vmatpush1.xpose.msra.mxu0 0.0
        %335 = vmatprep.subr.mxu0 0.0
        %336 = vmatpush1.xpose.msra.mxu0 0.0
        %337 = vmatprep.mubr.f32.mxu0 0.0
        %338 = vmatmul.mubr.f32.gmra.mrb[0].mxu0 %v255
        %v339 = vpop.f32.mrb[0].mxu0
        %v340 = vadd.f32 0.0, %v339
        %v341 = vpop.f32.mrb[0].mxu0
        %342 = vmatprep.mubr.f32.mxu0 0.0
        %343 = vmatmul.mubr.f32.gmra.mrb[0].mxu0 %v256
        %v344 = vpop.f32.mrb[0].mxu0
        %v345 = vadd.f32 0.0, %v344
        %v346 = vpop.f32.mrb[0].mxu0
        %347 = vdwg.mxu0
        %v348 = vadd.f32 %v253, %v340
        %v349 = vadd.f32 %v254, %v345
        %350 = vst [vmem:[#allocation2] sm:$0xff] %v348
        %351 = vst [vmem:[#allocation2 + $0x8] sm:$0xff] %v349
        // Predicated region
        $region37: #{_mha_self.3} parent=31 // pred_check
          %p352 = pneg %p247
        $region38: #{_mha_self.3} parent=31 // pred_check_branch
          %354 = sbr.rel (%p352) target = $region40
        $region39: #{_mha_self.3} parent=31 // pred_region
          %v355 = vld [vmem:[#allocation2] sm:$0xff]
          %v356 = vld [vmem:[#allocation2 + $0x8] sm:$0xff]
          %v357 = vld [vmem:[%s245] sm:$0x1]
          %v359 = vlaneseq
          %v360 = vshrl.u32 %v359, 7
          %v361 = vsub.s32 0, %v360
          %v362 = vrot.slane %v357, %v361
          %v364 = vadd.f32 %v355, %v362
          %v365 = vadd.f32 %v356, %v362
          %366 = vst [vmem:[%s224] sm:$0xff] %v364
          %367 = vst [vmem:[%s224 + $0x8] sm:$0xff] %v365
        $region40: #{_mha_self.3} parent=31 // pred_fallthru
          _
        %s368 = sand.u32 %s125, 1
        %s369 = sand.u32 %s125, 1
        %s370 = smul.addr %s369, 16
        %s371 = scalar_lea.vmem [#allocation3], %s370
        // Predicated region
        $region41: #{_mha_self.3} parent=31 // pred_check
          %p372 = pneg %p135
        $region42: #{_mha_self.3} parent=31 // pred_check_branch
          %374 = sbr.rel (%p372) target = $region44
        $region43: #{_mha_self.3} parent=31 // pred_region
          %s375 = smul.u32 2, %s19
          %s376 = smul.addr %s375, 3
          %s377 = sadd.s32 %s20, %s376
          %s378 = smul.addr %s377, 8
          %s379 = scalar_lea.vmem %s3, %s378
          // Predicated region
          $region45: #{_mha_self.3} parent=43 // pred_check
            _
          $region46: #{_mha_self.3} parent=43 // pred_check_branch
            %381 = sbr.rel (0) target = $region48
          $region47: #{_mha_self.3} parent=43 // pred_region
            // Predicated region
            $region49: #{_mha_self.3} parent=47 // pred_check
              _
            $region50: #{_mha_self.3} parent=47 // pred_check_branch
              %383 = sbr.rel (0) target = $region52
            $region51: #{_mha_self.3} parent=47 // pred_region
              // Predicated region
              $region64: #{_mha_self.3} parent=51 // pred_check
                _
              $region65: #{_mha_self.3} parent=51 // pred_check_branch
                %400 = sbr.rel (0) target = $region67
              $region66: #{_mha_self.3} parent=51 // pred_region
                loop: start=0, step=1, limit=1
                $region68: #{_mha_self.3} parent=66 // loop_pre_header
                  _
                $region69: #{_mha_self.3} parent=66 // loop_header
                  %s402 = sphi 0, %s406
                  %p403 = scmp.ge.s32.totalorder %s402, 1
                  %s407 = sphi %s371, %s371
                  %s408 = sphi %s379, %s379
                $region70: #{_mha_self.3} parent=66 // loop_header_branch
                  %405 = sbr.rel (%p403) target = $region74
                $region71: #{_mha_self.3} parent=66 // loop_body
                  %v409 = vld [vmem:[%s407] sm:$0xff]
                  %410 = vst [vmem:[%s408] sm:$0xff] %v409
                  %v411 = vld [vmem:[%s407 + $0x8] sm:$0xff]
                  %412 = vst [vmem:[%s408 + $0x18] sm:$0xff] %v411
                $region72: #{_mha_self.3} parent=66 // loop_footer
                  %s406 = sadd.s32 1, %s402
                $region73: #{_mha_self.3} parent=66 // loop_footer_branch
                  %401 = sbr.rel target = $region69
                $region74: #{_mha_self.3} parent=66 // loop_exit
                  _
              $region67: #{_mha_self.3} parent=51 // pred_fallthru
                _
              // Predicated region
              $region75: #{_mha_self.3} parent=51 // pred_check
                _
              $region76: #{_mha_self.3} parent=51 // pred_check_branch
                %414 = sbr.rel target = $region78
              $region77: #{_mha_self.3} parent=51 // pred_region
                _
              $region78: #{_mha_self.3} parent=51 // pred_fallthru
                _
            $region52: #{_mha_self.3} parent=47 // pred_fallthru
              _
            // Predicated region
            $region53: #{_mha_self.3} parent=47 // pred_check
              _
            $region54: #{_mha_self.3} parent=47 // pred_check_branch
              %385 = sbr.rel target = $region56
            $region55: #{_mha_self.3} parent=47 // pred_region
              loop: start=0, step=1, limit=1
              $region57: #{_mha_self.3} parent=55 // loop_pre_header
                _
              $region58: #{_mha_self.3} parent=55 // loop_header
                %s388 = sphi 0, %s392
                %p389 = scmp.ge.s32.totalorder %s388, 1
                %s393 = sphi %s371, %s371
                %s394 = sphi %s379, %s379
              $region59: #{_mha_self.3} parent=55 // loop_header_branch
                %391 = sbr.rel (%p389) target = $region63
              $region60: #{_mha_self.3} parent=55 // loop_body
                %v395 = vld [vmem:[%s393] sm:$0xff]
                %396 = vst [vmem:[%s394] sm:$0xff] %v395
                %v397 = vld [vmem:[%s393 + $0x8] sm:$0xff]
                %398 = vst [vmem:[%s394 + $0x18] sm:$0xff] %v397
              $region61: #{_mha_self.3} parent=55 // loop_footer
                %s392 = sadd.s32 1, %s388
              $region62: #{_mha_self.3} parent=55 // loop_footer_branch
                %387 = sbr.rel target = $region58
              $region63: #{_mha_self.3} parent=55 // loop_exit
                _
            $region56: #{_mha_self.3} parent=47 // pred_fallthru
              _
          $region48: #{_mha_self.3} parent=43 // pred_fallthru
            _
          %415 = vnop
        $region44: #{_mha_self.3} parent=31 // pred_fallthru
          _
      $region32: #{_mha_self.3} parent=5 // pred_fallthru
        _
      %p416 = scmp.le.s32.totalorder 2, %s9
      // Predicated region
      $region79: #{_mha_self.3} parent=5 // pred_check
        %p417 = pneg %p416
      $region80: #{_mha_self.3} parent=5 // pred_check_branch
        %419 = sbr.rel (%p417) target = $region82
      $region81: #{_mha_self.3} parent=5 // pred_region
        %s420 = ssub.s32 %s9, 2
        // Predicated region
        $region83: #{_mha_self.3} parent=81 // pred_check
          %p421 = pneg %p141
        $region84: #{_mha_self.3} parent=81 // pred_check_branch
          %423 = sbr.rel (%p421) target = $region86
        $region85: #{_mha_self.3} parent=81 // pred_region
          %s424 = sand.u32 %s126, 1
          %s425 = sand.u32 %s126, 1
          %s426 = smul.addr %s425, 16
          %s427 = scalar_lea.vmem [#allocation3], %s426
        $region86: #{_mha_self.3} parent=81 // pred_fallthru
          _
      $region82: #{_mha_self.3} parent=5 // pred_fallthru
        _
    $region6: #{_mha_self.3} parent=1 // loop_footer
      %s13 = sadd.s32 1, %s9
    $region7: #{_mha_self.3} parent=1 // loop_footer_branch
      %8 = sbr.rel target = $region3
    $region8: #{_mha_self.3} parent=1 // loop_exit
      _

// kernel: _mha_self.4
$region0: #{_mha_self.4}
  #allocation0 [shape = 'u32[]', space=smem, size = 0x4, offset = 0x4, fixed_abs, tag = 'smem constant byte address 0x4 - core index']
  #allocation1 [shape = 'u32[144,128]{1,0:T(1,128)}', space=vmem, size = 0x12000, scoped, tag = 'internal scratch']
  %s0 = inlined_call_operand.vmem [shape: f32[2,8,384], index: 0, kind: input, shape index: {}, may-alias: {0,1,2}]
  %s1 = inlined_call_operand.vmem [shape: f32[2,8,384], index: 1, kind: input, shape index: {}, may-alias: {0,1,2}]
  %s2 = inlined_call_operand.vmem [shape: f32[2,8,384], index: 2, kind: input, shape index: {}, may-alias: {0,1,2}]
  %s3 = inlined_call_operand.vmem [shape: f32[1,1,8,8], index: 3, kind: input, shape index: {}]
  %s4 = inlined_call_operand.vmem [shape: f32[2,8,128], index: 4, kind: output, shape index: {0}]
  %s5 = inlined_call_operand.hbm [shape: f32[2,4,8,8], index: 5, kind: output, shape index: {1}]
  %6 = xla_tuple %s4, %s5
  %s7 = sld [smem:[#allocation0]]
  $region57: #{_mha_self.4} parent=0
    _
  %s9 = ssub.s32 1, %s7
  %s10 = scalar_select 0, %s9, %s7
  $region1: #{_mha_self.4} parent=0
    #allocation2 [shape = 'u8[32768]{0}', space=vmem, size = 0x8000, scoped, tag = 'output window, operand 1']
    #allocation3 [shape = 's32[2]{0}', space=sflag, size = 0x8, scoped, tag = 'scoped memory for _mha_self.4']
    %11 = vsyncpa [#allocation3], 0
    %s12 = scalar_lea.sflag [#allocation3], 1
    %13 = vsyncpa %s12, 0
    loop: start=0, step=1, limit=4
    $region2: #{_mha_self.4} parent=1 // loop_pre_header
      _
    $region3: #{_mha_self.4} parent=1 // loop_header
      %s15 = sphi 0, %s19
      %p16 = scmp.ge.s32.totalorder %s15, 4
      %s22 = sphi 0, %s34
      %s23 = sphi 0, %s30
      %s24 = sphi 0, %s22
      %s25 = sphi 0, %s23
      %s26 = sphi 0, %s24
      %s27 = sphi 0, %s25
      %s39 = sphi 0, %s41
      %s42 = sphi 0, %s39
      %s43 = sphi 0, %s42
      %s59 = sphi 0, %s43
      %s65 = sphi 0, %s67
      %s68 = sphi 0, %s65
      %s69 = sphi 0, %s68
      %s85 = sphi 0, %s69
      %s91 = sphi 0, %s93
      %s94 = sphi 0, %s91
      %s95 = sphi 0, %s94
      %s111 = sphi 0, %s95
      %s117 = sphi 0, %s119
      %s120 = sphi 0, %s117
      %s121 = sphi 0, %s120
      %s137 = sphi 0, %s121
      %s145 = sphi 0, %s147
      %s148 = sphi 0, %s145
      %s149 = sphi 0, %s148
      %s165 = sphi 0, %s149
      %s173 = sphi 0, %s175
      %s176 = sphi 0, %s173
      %s177 = sphi 0, %s176
      %s193 = sphi 0, %s177
    $region4: #{_mha_self.4} parent=1 // loop_header_branch
      %18 = sbr.rel (%p16) target = $region8
    $region5: #{_mha_self.4} parent=1 // loop_body
      %s20 = ssub.s32 %s15, 1
      %s21 = ssub.s32 %s15, 2
      %s28 = sadd.s32 1, %s23
      %p29 = scmp.ge.s32.totalorder %s28, 1
      %s30 = scalar_select %p29, 0, %s28
      %s31 = sadd.s32 1, %s22
      %s32 = scalar_select %p29, %s31, %s22
      %p33 = scmp.ge.s32.totalorder %s32, 2
      %s34 = scalar_select %p33, 0, %s32
      %s35 = ssub.s32 %s22, %s34
      %s36 = ssub.s32 %s23, %s30
      %s37 = sor.u32 %s35, %s36
      %p38 = scmp.eq.s32.totalorder %s37, 0
      %s40 = sadd.s32 %s39, 1
      %s41 = scalar_select %p38, %s39, %s40
      %p44 = pneg %p38
      %p45 = scmp.eq.s32.totalorder %s15, 1
      %p46 = por %p44, %p45
      %p47 = scmp.ne.s32.totalorder %s39, %s42
      %p48 = scmp.eq.s32.totalorder %s15, 0
      %p49 = por %p47, %p48
      %p50 = scmp.ne.s32.totalorder %s39, %s42
      %p51 = scmp.eq.s32.totalorder %s20, 1
      %p52 = por %p50, %p51
      %p53 = scmp.ne.s32.totalorder %s42, %s43
      %p54 = scmp.eq.s32.totalorder %s20, 0
      %p55 = por %p53, %p54
      %p56 = scmp.ne.s32.totalorder %s42, %s43
      %p57 = scmp.eq.s32.totalorder %s21, 1
      %p58 = por %p56, %p57
      %p60 = scmp.ne.s32.totalorder %s43, %s59
      %p61 = scmp.eq.s32.totalorder %s21, 0
      %p62 = por %p60, %p61
      %s63 = ssub.s32 %s22, %s34
      %p64 = scmp.eq.s32.totalorder %s63, 0
      %s66 = sadd.s32 %s65, 1
      %s67 = scalar_select %p64, %s65, %s66
      %p70 = pneg %p64
      %p71 = scmp.eq.s32.totalorder %s15, 1
      %p72 = por %p70, %p71
      %p73 = scmp.ne.s32.totalorder %s65, %s68
      %p74 = scmp.eq.s32.totalorder %s15, 0
      %p75 = por %p73, %p74
      %p76 = scmp.ne.s32.totalorder %s65, %s68
      %p77 = scmp.eq.s32.totalorder %s20, 1
      %p78 = por %p76, %p77
      %p79 = scmp.ne.s32.totalorder %s68, %s69
      %p80 = scmp.eq.s32.totalorder %s20, 0
      %p81 = por %p79, %p80
      %p82 = scmp.ne.s32.totalorder %s68, %s69
      %p83 = scmp.eq.s32.totalorder %s21, 1
      %p84 = por %p82, %p83
      %p86 = scmp.ne.s32.totalorder %s69, %s85
      %p87 = scmp.eq.s32.totalorder %s21, 0
      %p88 = por %p86, %p87
      %s89 = ssub.s32 %s22, %s34
      %p90 = scmp.eq.s32.totalorder %s89, 0
      %s92 = sadd.s32 %s91, 1
      %s93 = scalar_select %p90, %s91, %s92
      %p96 = pneg %p90
      %p97 = scmp.eq.s32.totalorder %s15, 1
      %p98 = por %p96, %p97
      %p99 = scmp.ne.s32.totalorder %s91, %s94
      %p100 = scmp.eq.s32.totalorder %s15, 0
      %p101 = por %p99, %p100
      %p102 = scmp.ne.s32.totalorder %s91, %s94
      %p103 = scmp.eq.s32.totalorder %s20, 1
      %p104 = por %p102, %p103
      %p105 = scmp.ne.s32.totalorder %s94, %s95
      %p106 = scmp.eq.s32.totalorder %s20, 0
      %p107 = por %p105, %p106
      %p108 = scmp.ne.s32.totalorder %s94, %s95
      %p109 = scmp.eq.s32.totalorder %s21, 1
      %p110 = por %p108, %p109
      %p112 = scmp.ne.s32.totalorder %s95, %s111
      %p113 = scmp.eq.s32.totalorder %s21, 0
      %p114 = por %p112, %p113
      %s115 = ssub.s32 %s23, %s30
      %p116 = scmp.eq.s32.totalorder %s115, 0
      %s118 = sadd.s32 %s117, 1
      %s119 = scalar_select %p116, %s117, %s118
      %p122 = pneg %p116
      %p123 = scmp.eq.s32.totalorder %s15, 1
      %p124 = por %p122, %p123
      %p125 = scmp.ne.s32.totalorder %s117, %s120
      %p126 = scmp.eq.s32.totalorder %s15, 0
      %p127 = por %p125, %p126
      %p128 = scmp.ne.s32.totalorder %s117, %s120
      %p129 = scmp.eq.s32.totalorder %s20, 1
      %p130 = por %p128, %p129
      %p131 = scmp.ne.s32.totalorder %s120, %s121
      %p132 = scmp.eq.s32.totalorder %s20, 0
      %p133 = por %p131, %p132
      %p134 = scmp.ne.s32.totalorder %s120, %s121
      %p135 = scmp.eq.s32.totalorder %s21, 1
      %p136 = por %p134, %p135
      %p138 = scmp.ne.s32.totalorder %s121, %s137
      %p139 = scmp.eq.s32.totalorder %s21, 0
      %p140 = por %p138, %p139
      %s141 = ssub.s32 %s22, %s34
      %s142 = ssub.s32 %s23, %s30
      %s143 = sor.u32 %s141, %s142
      %p144 = scmp.eq.s32.totalorder %s143, 0
      %s146 = sadd.s32 %s145, 1
      %s147 = scalar_select %p144, %s145, %s146
      %p150 = pneg %p144
      %p151 = scmp.eq.s32.totalorder %s15, 1
      %p152 = por %p150, %p151
      %p153 = scmp.ne.s32.totalorder %s145, %s148
      %p154 = scmp.eq.s32.totalorder %s15, 0
      %p155 = por %p153, %p154
      %p156 = scmp.ne.s32.totalorder %s145, %s148
      %p157 = scmp.eq.s32.totalorder %s20, 1
      %p158 = por %p156, %p157
      %p159 = scmp.ne.s32.totalorder %s148, %s149
      %p160 = scmp.eq.s32.totalorder %s20, 0
      %p161 = por %p159, %p160
      %p162 = scmp.ne.s32.totalorder %s148, %s149
      %p163 = scmp.eq.s32.totalorder %s21, 1
      %p164 = por %p162, %p163
      %p166 = scmp.ne.s32.totalorder %s149, %s165
      %p167 = scmp.eq.s32.totalorder %s21, 0
      %p168 = por %p166, %p167
      %s169 = ssub.s32 %s22, %s34
      %s170 = ssub.s32 %s23, %s30
      %s171 = sor.u32 %s169, %s170
      %p172 = scmp.eq.s32.totalorder %s171, 0
      %s174 = sadd.s32 %s173, 1
      %s175 = scalar_select %p172, %s173, %s174
      %p178 = pneg %p172
      %p179 = scmp.eq.s32.totalorder %s15, 1
      %p180 = por %p178, %p179
      %p181 = scmp.ne.s32.totalorder %s173, %s176
      %p182 = scmp.eq.s32.totalorder %s15, 0
      %p183 = por %p181, %p182
      %p184 = scmp.ne.s32.totalorder %s173, %s176
      %p185 = scmp.eq.s32.totalorder %s20, 1
      %p186 = por %p184, %p185
      %p187 = scmp.ne.s32.totalorder %s176, %s177
      %p188 = scmp.eq.s32.totalorder %s20, 0
      %p189 = por %p187, %p188
      %p190 = scmp.ne.s32.totalorder %s176, %s177
      %p191 = scmp.eq.s32.totalorder %s21, 1
      %p192 = por %p190, %p191
      %p194 = scmp.ne.s32.totalorder %s177, %s193
      %p195 = scmp.eq.s32.totalorder %s21, 0
      %p196 = por %p194, %p195
      %p197 = scmp.le.s32.totalorder 1, %s15
      %p198 = scmp.lt.s32.totalorder %s15, 3
      %p199 = pnand %p197, %p198
      %p200 = pneg %p199
      // Predicated region
      $region9: #{_mha_self.4} parent=5 // pred_check
        _
      $region10: #{_mha_self.4} parent=5 // pred_check_branch
        %202 = sbr.rel (%p199) target = $region12
      $region11: #{_mha_self.4} parent=5 // pred_region
        %s203 = ssub.s32 %s15, 1
        // Predicated region
        $region13: #{_mha_self.4} parent=11 // pred_check
          %p204 = pneg %p133
        $region14: #{_mha_self.4} parent=11 // pred_check_branch
          %206 = sbr.rel (%p204) target = $region16
        $region15: #{_mha_self.4} parent=11 // pred_region
          %p207 = scmp.lt.s32.totalorder %s25, 0
          %s208 = scalar_select %p207, %s25, 0
          %s209 = smul.addr %s208, 8
          %s210 = scalar_lea.vmem %s3, %s209
        $region16: #{_mha_self.4} parent=11 // pred_fallthru
          _
      $region12: #{_mha_self.4} parent=5 // pred_fallthru
        _
      %p211 = scmp.lt.s32.totalorder %s15, 2
      // Predicated region
      $region17: #{_mha_self.4} parent=5 // pred_check
        %p212 = pneg %p211
      $region18: #{_mha_self.4} parent=5 // pred_check_branch
        %214 = sbr.rel (%p212) target = $region20
      $region19: #{_mha_self.4} parent=5 // pred_region
        // Predicated region
        $region21: #{_mha_self.4} parent=19 // pred_check
          %p215 = pneg %p49
        $region22: #{_mha_self.4} parent=19 // pred_check_branch
          %217 = sbr.rel (%p215) target = $region24
        $region23: #{_mha_self.4} parent=19 // pred_region
          %p218 = scmp.lt.s32.totalorder %s22, 1
          %s219 = scalar_select %p218, %s22, 1
          %p220 = scmp.lt.s32.totalorder %s23, 0
          %s221 = scalar_select %p220, %s23, 0
          %s222 = smul.addr %s221, 3
          %s223 = smul.addr %s219, 3
          %s224 = sadd.s32 %s222, %s223
          %s225 = smul.addr %s224, 8
          %s226 = scalar_lea.vmem %s0, %s225
        $region24: #{_mha_self.4} parent=19 // pred_fallthru
          _
        // Predicated region
        $region25: #{_mha_self.4} parent=19 // pred_check
          %p227 = pneg %p75
        $region26: #{_mha_self.4} parent=19 // pred_check_branch
          %229 = sbr.rel (%p227) target = $region28
        $region27: #{_mha_self.4} parent=19 // pred_region
          %p230 = scmp.lt.s32.totalorder %s22, 1
          %s231 = scalar_select %p230, %s22, 1
          %s232 = smul.addr %s231, 3
          %s233 = sadd.s32 1, %s232
          %s234 = smul.addr %s233, 8
          %s235 = scalar_lea.vmem %s1, %s234
        $region28: #{_mha_self.4} parent=19 // pred_fallthru
          _
        // Predicated region
        $region29: #{_mha_self.4} parent=19 // pred_check
          %p236 = pneg %p101
        $region30: #{_mha_self.4} parent=19 // pred_check_branch
          %238 = sbr.rel (%p236) target = $region32
        $region31: #{_mha_self.4} parent=19 // pred_region
          %p239 = scmp.lt.s32.totalorder %s22, 1
          %s240 = scalar_select %p239, %s22, 1
          %s241 = smul.addr %s240, 3
          %s242 = sadd.s32 2, %s241
          %s243 = smul.addr %s242, 8
          %s244 = scalar_lea.vmem %s2, %s243
        $region32: #{_mha_self.4} parent=19 // pred_fallthru
          _
      $region20: #{_mha_self.4} parent=5 // pred_fallthru
        _
      %p245 = scmp.le.s32.totalorder 1, %s15
      %p246 = scmp.lt.s32.totalorder %s15, 3
      %p247 = pnand %p245, %p246
      %p248 = pneg %p247
      // Predicated region
      $region33: #{_mha_self.4} parent=5 // pred_check
        _
      $region34: #{_mha_self.4} parent=5 // pred_check_branch
        %250 = sbr.rel (%p247) target = $region36
      $region35: #{_mha_self.4} parent=5 // pred_region
        %s251 = ssub.s32 %s15, 1
        %p252 = scmp.lt.s32.totalorder %s24, 1
        %s253 = scalar_select %p252, %s24, 1
        %p254 = scmp.lt.s32.totalorder %s25, 0
        %s255 = scalar_select %p254, %s25, 0
        %s256 = smul.addr %s255, 3
        %s257 = smul.addr %s253, 3
        %s258 = sadd.s32 %s256, %s257
        %s259 = smul.addr %s258, 8
        %s260 = scalar_lea.vmem %s0, %s259
        %p261 = pneg %p55
        %p262 = pneg %p52
        %p263 = scmp.lt.s32.totalorder %s24, 1
        %s264 = scalar_select %p263, %s24, 1
        %s265 = smul.addr %s264, 3
        %s266 = sadd.s32 1, %s265
        %s267 = smul.addr %s266, 8
        %s268 = scalar_lea.vmem %s1, %s267
        %p269 = pneg %p81
        %p270 = pneg %p78
        %p271 = scmp.lt.s32.totalorder %s24, 1
        %s272 = scalar_select %p271, %s24, 1
        %s273 = smul.addr %s272, 3
        %s274 = sadd.s32 2, %s273
        %s275 = smul.addr %s274, 8
        %s276 = scalar_lea.vmem %s2, %s275
        %p277 = pneg %p107
        %p278 = pneg %p104
        %p279 = scmp.lt.s32.totalorder %s25, 0
        %s280 = scalar_select %p279, %s25, 0
        %s281 = smul.addr %s280, 8
        %s282 = scalar_lea.vmem %s3, %s281
        %p283 = pneg %p133
        %p284 = pneg %p130
        %p285 = pneg %p161
        %p286 = pneg %p158
        %p287 = scmp.lt.s32.totalorder %s24, 1
        %s288 = scalar_select %p287, %s24, 1
        %p289 = scmp.lt.s32.totalorder %s25, 0
        %s290 = scalar_select %p289, %s25, 0
        %s291 = sadd.s32 %s290, %s288
        %s292 = smul.addr %s291, 8
        %s293 = scalar_lea.vmem %s4, %s292
        %p294 = pneg %p189
        %p295 = pneg %p186
        %s296 = sand.u32 %s176, 1
        %s297 = scalar_lea.sflag [#allocation3], %s296
        %s298 = sand.u32 %s176, 1
        %s299 = smul.addr %s298, 32
        %s300 = scalar_lea.vmem [#allocation2], %s299
        %p301 = scmp.lt.s32.totalorder %s24, 1
        %s302 = scalar_select %p301, %s24, 1
        %p303 = scmp.lt.s32.totalorder %s25, 0
        %s304 = scalar_select %p303, %s25, 0
        %s305 = smul.addr %s304, 3
        %s306 = smul.addr %s302, 3
        %s307 = sadd.s32 %s305, %s306
        %s308 = smul.addr %s307, 8
        %s309 = scalar_lea.vmem %s0, %s308
        %p310 = scmp.lt.s32.totalorder %s24, 1
        %s311 = scalar_select %p310, %s24, 1
        %s312 = smul.addr %s311, 3
        %s313 = sadd.s32 1, %s312
        %s314 = smul.addr %s313, 8
        %s315 = scalar_lea.vmem %s1, %s314
        %p316 = scmp.lt.s32.totalorder %s24, 1
        %s317 = scalar_select %p316, %s24, 1
        %s318 = smul.addr %s317, 3
        %s319 = sadd.s32 2, %s318
        %s320 = smul.addr %s319, 8
        %s321 = scalar_lea.vmem %s2, %s320
        %p322 = scmp.lt.s32.totalorder %s25, 0
        %s323 = scalar_select %p322, %s25, 0
        %s324 = smul.addr %s323, 8
        %s325 = scalar_lea.vmem %s3, %s324
        %p326 = scmp.lt.s32.totalorder %s24, 1
        %s327 = scalar_select %p326, %s24, 1
        %p328 = scmp.lt.s32.totalorder %s25, 0
        %s329 = scalar_select %p328, %s25, 0
        %s330 = sadd.s32 %s329, %s327
        %s331 = smul.addr %s330, 8
        %s332 = scalar_lea.vmem %s4, %s331
        %v333 = vld [vmem:[%s309] sm:$0xff]
        %v334 = vmul.f32 %v333, 0.17677669
        %v335 = vld [vmem:[%s315] sm:$0xff]
        %v336 = vld [vmem:[%s321] sm:$0xff]
        %v337 = vld [vmem:[%s325] sm:$0xff]
        %v338 = vmul.f32 %v337, -1e+09
        %vm339 = vcmask 261120
        %v341 = vsel %vm339, %v334, 0
        %v344 = vsel %vm339, %v335, 0
        %346 = vmatprep.subr.mxu0 0.0
        %347 = vmatpush1.xpose.msra.mxu0 %v344
        %348 = vmatprep.subr.mxu0 0.0
        %349 = vmatpush1.xpose.msra.mxu0 0.0
        %350 = vmatprep.subr.mxu0 0.0
        %351 = vmatpush1.xpose.msra.mxu0 0.0
        %352 = vmatprep.subr.mxu0 0.0
        %353 = vmatpush1.xpose.msra.mxu0 0.0
        %354 = vmatprep.subr.mxu0 0.0
        %355 = vmatpush1.xpose.msra.mxu0 0.0
        %356 = vmatprep.subr.mxu0 0.0
        %357 = vmatpush1.xpose.msra.mxu0 0.0
        %358 = vmatprep.subr.mxu0 0.0
        %359 = vmatpush1.xpose.msra.mxu0 0.0
        %360 = vmatprep.subr.mxu0 0.0
        %361 = vmatpush1.xpose.msra.mxu0 0.0
        %362 = vmatprep.subr.mxu0 0.0
        %363 = vmatpush1.xpose.msra.mxu0 0.0
        %364 = vmatprep.subr.mxu0 0.0
        %365 = vmatpush1.xpose.msra.mxu0 0.0
        %366 = vmatprep.subr.mxu0 0.0
        %367 = vmatpush1.xpose.msra.mxu0 0.0
        %368 = vmatprep.subr.mxu0 0.0
        %369 = vmatpush1.xpose.msra.mxu0 0.0
        %370 = vmatprep.subr.mxu0 0.0
        %371 = vmatpush1.xpose.msra.mxu0 0.0
        %372 = vmatprep.subr.mxu0 0.0
        %373 = vmatpush1.xpose.msra.mxu0 0.0
        %374 = vmatprep.subr.mxu0 0.0
        %375 = vmatpush1.xpose.msra.mxu0 0.0
        %376 = vmatprep.subr.mxu0 0.0
        %377 = vmatpush1.xpose.msra.mxu0 0.0
        %378 = vmatprep.subr.mxu0 0.0
        %379 = vmatpush1.xpose.msra.mxu0 0.0
        %380 = vmatprep.subr.mxu0 0.0
        %381 = vmatpush1.xpose.msra.mxu0 0.0
        %382 = vmatprep.subr.mxu0 0.0
        %383 = vmatpush1.xpose.msra.mxu0 0.0
        %384 = vmatprep.subr.mxu0 0.0
        %385 = vmatpush1.xpose.msra.mxu0 0.0
        %386 = vmatprep.subr.mxu0 0.0
        %387 = vmatpush1.xpose.msra.mxu0 0.0
        %388 = vmatprep.subr.mxu0 0.0
        %389 = vmatpush1.xpose.msra.mxu0 0.0
        %390 = vmatprep.subr.mxu0 0.0
        %391 = vmatpush1.xpose.msra.mxu0 0.0
        %392 = vmatprep.subr.mxu0 0.0
        %393 = vmatpush1.xpose.msra.mxu0 0.0
        %394 = vmatprep.subr.mxu0 0.0
        %395 = vmatpush1.xpose.msra.mxu0 0.0
        %396 = vmatprep.subr.mxu0 0.0
        %397 = vmatpush1.xpose.msra.mxu0 0.0
        %398 = vmatprep.subr.mxu0 0.0
        %399 = vmatpush1.xpose.msra.mxu0 0.0
        %400 = vmatprep.subr.mxu0 0.0
        %401 = vmatpush1.xpose.msra.mxu0 0.0
        %402 = vmatprep.subr.mxu0 0.0
        %403 = vmatpush1.xpose.msra.mxu0 0.0
        %404 = vmatprep.subr.mxu0 0.0
        %405 = vmatpush1.xpose.msra.mxu0 0.0
        %406 = vmatprep.subr.mxu0 0.0
        %407 = vmatpush1.xpose.msra.mxu0 0.0
        %408 = vmatprep.subr.mxu0 0.0
        %409 = vmatpush1.xpose.msra.mxu0 0.0
        %410 = vmatprep.mubr.f32.mxu0 0.0
        %411 = vmatmul.mubr.f32.gmra.mrb[0].mxu0 %v341
        %v412 = vpop.f32.mrb[0].mxu0
        %v413 = vadd.f32 %v338, %v412
        %v414 = vpop.f32.mrb[0].mxu0
        %415 = vdwg.mxu0
        %vm416 = vcmask 64512
        %v417 = vsel %vm416, %v413, -inf
        %418 = vmax.xlane.f32.xlu0 %v417
        %v419 = vpop.xlane.xlu0 %418
        %v420 = vsub.f32 %v413, %v419
        %v421 = vmul.f32 %v420, 1.442695
        %v422 = vpow.pop %v421
        %v423 = vsel %vm416, %v422, 0.0
        %424 = vadd.xlane.f32.xlu0 %v423
        %v425 = vpop.xlane.xlu0 %424
        %v426 = vrcp.pop %v425
        %v427 = vmul.f32 %v422, %v426
        %428 = vst.msk [vmem:[%s300] sm:$0xff] %vm416, %v427
        %v430 = vsel %vm416, %v427, 0
        %432 = vmatprep.subr.mxu0 0.0
        %433 = vmatpush1.msra.mxu0 %v336
        %434 = vmatprep.subr.mxu0 0.0
        %435 = vmatpush1.msra.mxu0 0.0
        %436 = vmatprep.subr.mxu0 0.0
        %437 = vmatpush1.msra.mxu0 0.0
        %438 = vmatprep.subr.mxu0 0.0
        %439 = vmatpush1.msra.mxu0 0.0
        %440 = vmatprep.subr.mxu0 0.0
        %441 = vmatpush1.msra.mxu0 0.0
        %442 = vmatprep.subr.mxu0 0.0
        %443 = vmatpush1.msra.mxu0 0.0
        %444 = vmatprep.subr.mxu0 0.0
        %445 = vmatpush1.msra.mxu0 0.0
        %446 = vmatprep.subr.mxu0 0.0
        %447 = vmatpush1.msra.mxu0 0.0
        %448 = vmatprep.subr.mxu0 0.0
        %449 = vmatpush1.msra.mxu0 0.0
        %450 = vmatprep.subr.mxu0 0.0
        %451 = vmatpush1.msra.mxu0 0.0
        %452 = vmatprep.subr.mxu0 0.0
        %453 = vmatpush1.msra.mxu0 0.0
        %454 = vmatprep.subr.mxu0 0.0
        %455 = vmatpush1.msra.mxu0 0.0
        %456 = vmatprep.subr.mxu0 0.0
        %457 = vmatpush1.msra.mxu0 0.0
        %458 = vmatprep.subr.mxu0 0.0
        %459 = vmatpush1.msra.mxu0 0.0
        %460 = vmatprep.subr.mxu0 0.0
        %461 = vmatpush1.msra.mxu0 0.0
        %462 = vmatprep.subr.mxu0 0.0
        %463 = vmatpush1.msra.mxu0 0.0
        %464 = vmatprep.subr.mxu0 0.0
        %465 = vmatpush1.msra.mxu0 0.0
        %466 = vmatprep.subr.mxu0 0.0
        %467 = vmatpush1.msra.mxu0 0.0
        %468 = vmatprep.subr.mxu0 0.0
        %469 = vmatpush1.msra.mxu0 0.0
        %470 = vmatprep.subr.mxu0 0.0
        %471 = vmatpush1.msra.mxu0 0.0
        %472 = vmatprep.subr.mxu0 0.0
        %473 = vmatpush1.msra.mxu0 0.0
        %474 = vmatprep.subr.mxu0 0.0
        %475 = vmatpush1.msra.mxu0 0.0
        %476 = vmatprep.subr.mxu0 0.0
        %477 = vmatpush1.msra.mxu0 0.0
        %478 = vmatprep.subr.mxu0 0.0
        %479 = vmatpush1.msra.mxu0 0.0
        %480 = vmatprep.subr.mxu0 0.0
        %481 = vmatpush1.msra.mxu0 0.0
        %482 = vmatprep.subr.mxu0 0.0
        %483 = vmatpush1.msra.mxu0 0.0
        %484 = vmatprep.subr.mxu0 0.0
        %485 = vmatpush1.msra.mxu0 0.0
        %486 = vmatprep.subr.mxu0 0.0
        %487 = vmatpush1.msra.mxu0 0.0
        %488 = vmatprep.subr.mxu0 0.0
        %489 = vmatpush1.msra.mxu0 0.0
        %490 = vmatprep.subr.mxu0 0.0
        %491 = vmatpush1.msra.mxu0 0.0
        %492 = vmatprep.subr.mxu0 0.0
        %493 = vmatpush1.msra.mxu0 0.0
        %494 = vmatprep.subr.mxu0 0.0
        %495 = vmatpush1.msra.mxu0 0.0
        %496 = vmatprep.mubr.f32.mxu0 0.0
        %497 = vmatmul.mubr.f32.gmra.mrb[0].mxu0 %v430
        %v498 = vpop.f32.mrb[0].mxu0
        %v499 = vadd.f32 0.0, %v498
        %v500 = vpop.f32.mrb[0].mxu0
        %501 = vdwg.mxu0
        %502 = vst.msk [vmem:[%s332] sm:$0xff] %vm339, %v499
        %503 = vrot.lane.b32.xlu0 %v334, 96
        %v504 = vpop.permute.xlu0 %503
        %505 = vrot.lane.b32.xlu0 %v335, 96
        %v506 = vpop.permute.xlu0 %505
        %v507 = vsel %vm339, %v504, 0
        %v509 = vsel %vm339, %v506, 0
        %511 = vmatprep.subr.mxu0 0.0
        %512 = vmatpush1.xpose.msra.mxu0 %v509
        %513 = vmatprep.subr.mxu0 0.0
        %514 = vmatpush1.xpose.msra.mxu0 0.0
        %515 = vmatprep.subr.mxu0 0.0
        %516 = vmatpush1.xpose.msra.mxu0 0.0
        %517 = vmatprep.subr.mxu0 0.0
        %518 = vmatpush1.xpose.msra.mxu0 0.0
        %519 = vmatprep.subr.mxu0 0.0
        %520 = vmatpush1.xpose.msra.mxu0 0.0
        %521 = vmatprep.subr.mxu0 0.0
        %522 = vmatpush1.xpose.msra.mxu0 0.0
        %523 = vmatprep.subr.mxu0 0.0
        %524 = vmatpush1.xpose.msra.mxu0 0.0
        %525 = vmatprep.subr.mxu0 0.0
        %526 = vmatpush1.xpose.msra.mxu0 0.0
        %527 = vmatprep.subr.mxu0 0.0
        %528 = vmatpush1.xpose.msra.mxu0 0.0
        %529 = vmatprep.subr.mxu0 0.0
        %530 = vmatpush1.xpose.msra.mxu0 0.0
        %531 = vmatprep.subr.mxu0 0.0
        %532 = vmatpush1.xpose.msra.mxu0 0.0
        %533 = vmatprep.subr.mxu0 0.0
        %534 = vmatpush1.xpose.msra.mxu0 0.0
        %535 = vmatprep.subr.mxu0 0.0
        %536 = vmatpush1.xpose.msra.mxu0 0.0
        %537 = vmatprep.subr.mxu0 0.0
        %538 = vmatpush1.xpose.msra.mxu0 0.0
        %539 = vmatprep.subr.mxu0 0.0
        %540 = vmatpush1.xpose.msra.mxu0 0.0
        %541 = vmatprep.subr.mxu0 0.0
        %542 = vmatpush1.xpose.msra.mxu0 0.0
        %543 = vmatprep.subr.mxu0 0.0
        %544 = vmatpush1.xpose.msra.mxu0 0.0
        %545 = vmatprep.subr.mxu0 0.0
        %546 = vmatpush1.xpose.msra.mxu0 0.0
        %547 = vmatprep.subr.mxu0 0.0
        %548 = vmatpush1.xpose.msra.mxu0 0.0
        %549 = vmatprep.subr.mxu0 0.0
        %550 = vmatpush1.xpose.msra.mxu0 0.0
        %551 = vmatprep.subr.mxu0 0.0
        %552 = vmatpush1.xpose.msra.mxu0 0.0
        %553 = vmatprep.subr.mxu0 0.0
        %554 = vmatpush1.xpose.msra.mxu0 0.0
        %555 = vmatprep.subr.mxu0 0.0
        %556 = vmatpush1.xpose.msra.mxu0 0.0
        %557 = vmatprep.subr.mxu0 0.0
        %558 = vmatpush1.xpose.msra.mxu0 0.0
        %559 = vmatprep.subr.mxu0 0.0
        %560 = vmatpush1.xpose.msra.mxu0 0.0
        %561 = vmatprep.subr.mxu0 0.0
        %562 = vmatpush1.xpose.msra.mxu0 0.0
        %563 = vmatprep.subr.mxu0 0.0
        %564 = vmatpush1.xpose.msra.mxu0 0.0
        %565 = vmatprep.subr.mxu0 0.0
        %566 = vmatpush1.xpose.msra.mxu0 0.0
        %567 = vmatprep.subr.mxu0 0.0
        %568 = vmatpush1.xpose.msra.mxu0 0.0
        %569 = vmatprep.subr.mxu0 0.0
        %570 = vmatpush1.xpose.msra.mxu0 0.0
        %571 = vmatprep.subr.mxu0 0.0
        %572 = vmatpush1.xpose.msra.mxu0 0.0
        %573 = vmatprep.subr.mxu0 0.0
        %574 = vmatpush1.xpose.msra.mxu0 0.0
        %575 = vmatprep.mubr.f32.mxu0 0.0
        %576 = vmatmul.mubr.f32.gmra.mrb[0].mxu0 %v507
        %v577 = vpop.f32.mrb[0].mxu0
        %v578 = vadd.f32 %v338, %v577
        %v579 = vpop.f32.mrb[0].mxu0
        %580 = vdwg.mxu0
        %v581 = vsel %vm416, %v578, -inf
        %582 = vmax.xlane.f32.xlu0 %v581
        %v583 = vpop.xlane.xlu0 %582
        %v584 = vsub.f32 %v578, %v583
        %v585 = vmul.f32 %v584, 1.442695
        %v586 = vpow.pop %v585
        %v587 = vsel %vm416, %v586, 0.0
        %588 = vadd.xlane.f32.xlu0 %v587
        %v589 = vpop.xlane.xlu0 %588
        %v590 = vrcp.pop %v589
        %v591 = vmul.f32 %v586, %v590
        %s592 = scalar_lea.vmem %s300, 8 [#allocation2]
        %593 = vst.msk [vmem:[%s592] sm:$0xff] %vm416, %v591
        %595 = vrot.lane.b32.xlu0 %v336, 96
        %v596 = vpop.permute.xlu0 %595
        %v599 = vsel %vm416, %v591, 0
        %601 = vmatprep.subr.mxu0 0.0
        %602 = vmatpush1.msra.mxu0 %v596
        %603 = vmatprep.subr.mxu0 0.0
        %604 = vmatpush1.msra.mxu0 0.0
        %605 = vmatprep.subr.mxu0 0.0
        %606 = vmatpush1.msra.mxu0 0.0
        %607 = vmatprep.subr.mxu0 0.0
        %608 = vmatpush1.msra.mxu0 0.0
        %609 = vmatprep.subr.mxu0 0.0
        %610 = vmatpush1.msra.mxu0 0.0
        %611 = vmatprep.subr.mxu0 0.0
        %612 = vmatpush1.msra.mxu0 0.0
        %613 = vmatprep.subr.mxu0 0.0
        %614 = vmatpush1.msra.mxu0 0.0
        %615 = vmatprep.subr.mxu0 0.0
        %616 = vmatpush1.msra.mxu0 0.0
        %617 = vmatprep.subr.mxu0 0.0
        %618 = vmatpush1.msra.mxu0 0.0
        %619 = vmatprep.subr.mxu0 0.0
        %620 = vmatpush1.msra.mxu0 0.0
        %621 = vmatprep.subr.mxu0 0.0
        %622 = vmatpush1.msra.mxu0 0.0
        %623 = vmatprep.subr.mxu0 0.0
        %624 = vmatpush1.msra.mxu0 0.0
        %625 = vmatprep.subr.mxu0 0.0
        %626 = vmatpush1.msra.mxu0 0.0
        %627 = vmatprep.subr.mxu0 0.0
        %628 = vmatpush1.msra.mxu0 0.0
        %629 = vmatprep.subr.mxu0 0.0
        %630 = vmatpush1.msra.mxu0 0.0
        %631 = vmatprep.subr.mxu0 0.0
        %632 = vmatpush1.msra.mxu0 0.0
        %633 = vmatprep.subr.mxu0 0.0
        %634 = vmatpush1.msra.mxu0 0.0
        %635 = vmatprep.subr.mxu0 0.0
        %636 = vmatpush1.msra.mxu0 0.0
        %637 = vmatprep.subr.mxu0 0.0
        %638 = vmatpush1.msra.mxu0 0.0
        %639 = vmatprep.subr.mxu0 0.0
        %640 = vmatpush1.msra.mxu0 0.0
        %641 = vmatprep.subr.mxu0 0.0
        %642 = vmatpush1.msra.mxu0 0.0
        %643 = vmatprep.subr.mxu0 0.0
        %644 = vmatpush1.msra.mxu0 0.0
        %645 = vmatprep.subr.mxu0 0.0
        %646 = vmatpush1.msra.mxu0 0.0
        %647 = vmatprep.subr.mxu0 0.0
        %648 = vmatpush1.msra.mxu0 0.0
        %649 = vmatprep.subr.mxu0 0.0
        %650 = vmatpush1.msra.mxu0 0.0
        %651 = vmatprep.subr.mxu0 0.0
        %652 = vmatpush1.msra.mxu0 0.0
        %653 = vmatprep.subr.mxu0 0.0
        %654 = vmatpush1.msra.mxu0 0.0
        %655 = vmatprep.subr.mxu0 0.0
        %656 = vmatpush1.msra.mxu0 0.0
        %657 = vmatprep.subr.mxu0 0.0
        %658 = vmatpush1.msra.mxu0 0.0
        %659 = vmatprep.subr.mxu0 0.0
        %660 = vmatpush1.msra.mxu0 0.0
        %661 = vmatprep.subr.mxu0 0.0
        %662 = vmatpush1.msra.mxu0 0.0
        %663 = vmatprep.subr.mxu0 0.0
        %664 = vmatpush1.msra.mxu0 0.0
        %665 = vmatprep.mubr.f32.mxu0 0.0
        %666 = vmatmul.mubr.f32.gmra.mrb[0].mxu0 %v599
        %v667 = vpop.f32.mrb[0].mxu0
        %v668 = vadd.f32 0.0, %v667
        %v669 = vpop.f32.mrb[0].mxu0
        %670 = vdwg.mxu0
        %672 = vrot.lane.b32.xlu0 %v668, 32
        %v673 = vpop.permute.xlu0 %672
        %vm675 = vcmask 523520
        %676 = vst.msk [vmem:[%s332] sm:$0xff] %vm675, %v673
        %677 = vrot.lane.b32.xlu0 %v334, 64
        %v678 = vpop.permute.xlu0 %677
        %679 = vrot.lane.b32.xlu0 %v335, 64
        %v680 = vpop.permute.xlu0 %679
        %v681 = vsel %vm339, %v678, 0
        %v683 = vsel %vm339, %v680, 0
        %685 = vmatprep.subr.mxu0 0.0
        %686 = vmatpush1.xpose.msra.mxu0 %v683
        %687 = vmatprep.subr.mxu0 0.0
        %688 = vmatpush1.xpose.msra.mxu0 0.0
        %689 = vmatprep.subr.mxu0 0.0
        %690 = vmatpush1.xpose.msra.mxu0 0.0
        %691 = vmatprep.subr.mxu0 0.0
        %692 = vmatpush1.xpose.msra.mxu0 0.0
        %693 = vmatprep.subr.mxu0 0.0
        %694 = vmatpush1.xpose.msra.mxu0 0.0
        %695 = vmatprep.subr.mxu0 0.0
        %696 = vmatpush1.xpose.msra.mxu0 0.0
        %697 = vmatprep.subr.mxu0 0.0
        %698 = vmatpush1.xpose.msra.mxu0 0.0
        %699 = vmatprep.subr.mxu0 0.0
        %700 = vmatpush1.xpose.msra.mxu0 0.0
        %701 = vmatprep.subr.mxu0 0.0
        %702 = vmatpush1.xpose.msra.mxu0 0.0
        %703 = vmatprep.subr.mxu0 0.0
        %704 = vmatpush1.xpose.msra.mxu0 0.0
        %705 = vmatprep.subr.mxu0 0.0
        %706 = vmatpush1.xpose.msra.mxu0 0.0
        %707 = vmatprep.subr.mxu0 0.0
        %708 = vmatpush1.xpose.msra.mxu0 0.0
        %709 = vmatprep.subr.mxu0 0.0
        %710 = vmatpush1.xpose.msra.mxu0 0.0
        %711 = vmatprep.subr.mxu0 0.0
        %712 = vmatpush1.xpose.msra.mxu0 0.0
        %713 = vmatprep.subr.mxu0 0.0
        %714 = vmatpush1.xpose.msra.mxu0 0.0
        %715 = vmatprep.subr.mxu0 0.0
        %716 = vmatpush1.xpose.msra.mxu0 0.0
        %717 = vmatprep.subr.mxu0 0.0
        %718 = vmatpush1.xpose.msra.mxu0 0.0
        %719 = vmatprep.subr.mxu0 0.0
        %720 = vmatpush1.xpose.msra.mxu0 0.0
        %721 = vmatprep.subr.mxu0 0.0
        %722 = vmatpush1.xpose.msra.mxu0 0.0
        %723 = vmatprep.subr.mxu0 0.0
        %724 = vmatpush1.xpose.msra.mxu0 0.0
        %725 = vmatprep.subr.mxu0 0.0
        %726 = vmatpush1.xpose.msra.mxu0 0.0
        %727 = vmatprep.subr.mxu0 0.0
        %728 = vmatpush1.xpose.msra.mxu0 0.0
        %729 = vmatprep.subr.mxu0 0.0
        %730 = vmatpush1.xpose.msra.mxu0 0.0
        %731 = vmatprep.subr.mxu0 0.0
        %732 = vmatpush1.xpose.msra.mxu0 0.0
        %733 = vmatprep.subr.mxu0 0.0
        %734 = vmatpush1.xpose.msra.mxu0 0.0
        %735 = vmatprep.subr.mxu0 0.0
        %736 = vmatpush1.xpose.msra.mxu0 0.0
        %737 = vmatprep.subr.mxu0 0.0
        %738 = vmatpush1.xpose.msra.mxu0 0.0
        %739 = vmatprep.subr.mxu0 0.0
        %740 = vmatpush1.xpose.msra.mxu0 0.0
        %741 = vmatprep.subr.mxu0 0.0
        %742 = vmatpush1.xpose.msra.mxu0 0.0
        %743 = vmatprep.subr.mxu0 0.0
        %744 = vmatpush1.xpose.msra.mxu0 0.0
        %745 = vmatprep.subr.mxu0 0.0
        %746 = vmatpush1.xpose.msra.mxu0 0.0
        %747 = vmatprep.subr.mxu0 0.0
        %748 = vmatpush1.xpose.msra.mxu0 0.0
        %749 = vmatprep.mubr.f32.mxu0 0.0
        %750 = vmatmul.mubr.f32.gmra.mrb[0].mxu0 %v681
        %v751 = vpop.f32.mrb[0].mxu0
        %v752 = vadd.f32 %v338, %v751
        %v753 = vpop.f32.mrb[0].mxu0
        %754 = vdwg.mxu0
        %v755 = vsel %vm416, %v752, -inf
        %756 = vmax.xlane.f32.xlu0 %v755
        %v757 = vpop.xlane.xlu0 %756
        %v758 = vsub.f32 %v752, %v757
        %v759 = vmul.f32 %v758, 1.442695
        %v760 = vpow.pop %v759
        %v761 = vsel %vm416, %v760, 0.0
        %762 = vadd.xlane.f32.xlu0 %v761
        %v763 = vpop.xlane.xlu0 %762
        %v764 = vrcp.pop %v763
        %v765 = vmul.f32 %v760, %v764
        %s766 = scalar_lea.vmem %s300, 16 [#allocation2]
        %767 = vst.msk [vmem:[%s766] sm:$0xff] %vm416, %v765
        %768 = vrot.lane.b32.xlu0 %v336, 64
        %v769 = vpop.permute.xlu0 %768
        %v772 = vsel %vm416, %v765, 0
        %774 = vmatprep.subr.mxu0 0.0
        %775 = vmatpush1.msra.mxu0 %v769
        %776 = vmatprep.subr.mxu0 0.0
        %777 = vmatpush1.msra.mxu0 0.0
        %778 = vmatprep.subr.mxu0 0.0
        %779 = vmatpush1.msra.mxu0 0.0
        %780 = vmatprep.subr.mxu0 0.0
        %781 = vmatpush1.msra.mxu0 0.0
        %782 = vmatprep.subr.mxu0 0.0
        %783 = vmatpush1.msra.mxu0 0.0
        %784 = vmatprep.subr.mxu0 0.0
        %785 = vmatpush1.msra.mxu0 0.0
        %786 = vmatprep.subr.mxu0 0.0
        %787 = vmatpush1.msra.mxu0 0.0
        %788 = vmatprep.subr.mxu0 0.0
        %789 = vmatpush1.msra.mxu0 0.0
        %790 = vmatprep.subr.mxu0 0.0
        %791 = vmatpush1.msra.mxu0 0.0
        %792 = vmatprep.subr.mxu0 0.0
        %793 = vmatpush1.msra.mxu0 0.0
        %794 = vmatprep.subr.mxu0 0.0
        %795 = vmatpush1.msra.mxu0 0.0
        %796 = vmatprep.subr.mxu0 0.0
        %797 = vmatpush1.msra.mxu0 0.0
        %798 = vmatprep.subr.mxu0 0.0
        %799 = vmatpush1.msra.mxu0 0.0
        %800 = vmatprep.subr.mxu0 0.0
        %801 = vmatpush1.msra.mxu0 0.0
        %802 = vmatprep.subr.mxu0 0.0
        %803 = vmatpush1.msra.mxu0 0.0
        %804 = vmatprep.subr.mxu0 0.0
        %805 = vmatpush1.msra.mxu0 0.0
        %806 = vmatprep.subr.mxu0 0.0
        %807 = vmatpush1.msra.mxu0 0.0
        %808 = vmatprep.subr.mxu0 0.0
        %809 = vmatpush1.msra.mxu0 0.0
        %810 = vmatprep.subr.mxu0 0.0
        %811 = vmatpush1.msra.mxu0 0.0
        %812 = vmatprep.subr.mxu0 0.0
        %813 = vmatpush1.msra.mxu0 0.0
        %814 = vmatprep.subr.mxu0 0.0
        %815 = vmatpush1.msra.mxu0 0.0
        %816 = vmatprep.subr.mxu0 0.0
        %817 = vmatpush1.msra.mxu0 0.0
        %818 = vmatprep.subr.mxu0 0.0
        %819 = vmatpush1.msra.mxu0 0.0
        %820 = vmatprep.subr.mxu0 0.0
        %821 = vmatpush1.msra.mxu0 0.0
        %822 = vmatprep.subr.mxu0 0.0
        %823 = vmatpush1.msra.mxu0 0.0
        %824 = vmatprep.subr.mxu0 0.0
        %825 = vmatpush1.msra.mxu0 0.0
        %826 = vmatprep.subr.mxu0 0.0
        %827 = vmatpush1.msra.mxu0 0.0
        %828 = vmatprep.subr.mxu0 0.0
        %829 = vmatpush1.msra.mxu0 0.0
        %830 = vmatprep.subr.mxu0 0.0
        %831 = vmatpush1.msra.mxu0 0.0
        %832 = vmatprep.subr.mxu0 0.0
        %833 = vmatpush1.msra.mxu0 0.0
        %834 = vmatprep.subr.mxu0 0.0
        %835 = vmatpush1.msra.mxu0 0.0
        %836 = vmatprep.subr.mxu0 0.0
        %837 = vmatpush1.msra.mxu0 0.0
        %838 = vmatprep.mubr.f32.mxu0 0.0
        %839 = vmatmul.mubr.f32.gmra.mrb[0].mxu0 %v772
        %v840 = vpop.f32.mrb[0].mxu0
        %v841 = vadd.f32 0.0, %v840
        %v842 = vpop.f32.mrb[0].mxu0
        %843 = vdwg.mxu0
        %845 = vrot.lane.b32.xlu0 %v841, 64
        %v846 = vpop.permute.xlu0 %845
        %vm848 = vcmask 785920
        %849 = vst.msk [vmem:[%s332] sm:$0xff] %vm848, %v846
        %850 = vrot.lane.b32.xlu0 %v334, 32
        %v851 = vpop.permute.xlu0 %850
        %852 = vrot.lane.b32.xlu0 %v335, 32
        %v853 = vpop.permute.xlu0 %852
        %v854 = vsel %vm339, %v851, 0
        %v856 = vsel %vm339, %v853, 0
        %858 = vmatprep.subr.mxu0 0.0
        %859 = vmatpush1.xpose.msra.mxu0 %v856
        %860 = vmatprep.subr.mxu0 0.0
        %861 = vmatpush1.xpose.msra.mxu0 0.0
        %862 = vmatprep.subr.mxu0 0.0
        %863 = vmatpush1.xpose.msra.mxu0 0.0
        %864 = vmatprep.subr.mxu0 0.0
        %865 = vmatpush1.xpose.msra.mxu0 0.0
        %866 = vmatprep.subr.mxu0 0.0
        %867 = vmatpush1.xpose.msra.mxu0 0.0
        %868 = vmatprep.subr.mxu0 0.0
        %869 = vmatpush1.xpose.msra.mxu0 0.0
        %870 = vmatprep.subr.mxu0 0.0
        %871 = vmatpush1.xpose.msra.mxu0 0.0
        %872 = vmatprep.subr.mxu0 0.0
        %873 = vmatpush1.xpose.msra.mxu0 0.0
        %874 = vmatprep.subr.mxu0 0.0
        %875 = vmatpush1.xpose.msra.mxu0 0.0
        %876 = vmatprep.subr.mxu0 0.0
        %877 = vmatpush1.xpose.msra.mxu0 0.0
        %878 = vmatprep.subr.mxu0 0.0
        %879 = vmatpush1.xpose.msra.mxu0 0.0
        %880 = vmatprep.subr.mxu0 0.0
        %881 = vmatpush1.xpose.msra.mxu0 0.0
        %882 = vmatprep.subr.mxu0 0.0
        %883 = vmatpush1.xpose.msra.mxu0 0.0
        %884 = vmatprep.subr.mxu0 0.0
        %885 = vmatpush1.xpose.msra.mxu0 0.0
        %886 = vmatprep.subr.mxu0 0.0
        %887 = vmatpush1.xpose.msra.mxu0 0.0
        %888 = vmatprep.subr.mxu0 0.0
        %889 = vmatpush1.xpose.msra.mxu0 0.0
        %890 = vmatprep.subr.mxu0 0.0
        %891 = vmatpush1.xpose.msra.mxu0 0.0
        %892 = vmatprep.subr.mxu0 0.0
        %893 = vmatpush1.xpose.msra.mxu0 0.0
        %894 = vmatprep.subr.mxu0 0.0
        %895 = vmatpush1.xpose.msra.mxu0 0.0
        %896 = vmatprep.subr.mxu0 0.0
        %897 = vmatpush1.xpose.msra.mxu0 0.0
        %898 = vmatprep.subr.mxu0 0.0
        %899 = vmatpush1.xpose.msra.mxu0 0.0
        %900 = vmatprep.subr.mxu0 0.0
        %901 = vmatpush1.xpose.msra.mxu0 0.0
        %902 = vmatprep.subr.mxu0 0.0
        %903 = vmatpush1.xpose.msra.mxu0 0.0
        %904 = vmatprep.subr.mxu0 0.0
        %905 = vmatpush1.xpose.msra.mxu0 0.0
        %906 = vmatprep.subr.mxu0 0.0
        %907 = vmatpush1.xpose.msra.mxu0 0.0
        %908 = vmatprep.subr.mxu0 0.0
        %909 = vmatpush1.xpose.msra.mxu0 0.0
        %910 = vmatprep.subr.mxu0 0.0
        %911 = vmatpush1.xpose.msra.mxu0 0.0
        %912 = vmatprep.subr.mxu0 0.0
        %913 = vmatpush1.xpose.msra.mxu0 0.0
        %914 = vmatprep.subr.mxu0 0.0
        %915 = vmatpush1.xpose.msra.mxu0 0.0
        %916 = vmatprep.subr.mxu0 0.0
        %917 = vmatpush1.xpose.msra.mxu0 0.0
        %918 = vmatprep.subr.mxu0 0.0
        %919 = vmatpush1.xpose.msra.mxu0 0.0
        %920 = vmatprep.subr.mxu0 0.0
        %921 = vmatpush1.xpose.msra.mxu0 0.0
        %922 = vmatprep.mubr.f32.mxu0 0.0
        %923 = vmatmul.mubr.f32.gmra.mrb[0].mxu0 %v854
        %v924 = vpop.f32.mrb[0].mxu0
        %v925 = vadd.f32 %v338, %v924
        %v926 = vpop.f32.mrb[0].mxu0
        %927 = vdwg.mxu0
        %v928 = vsel %vm416, %v925, -inf
        %929 = vmax.xlane.f32.xlu0 %v928
        %v930 = vpop.xlane.xlu0 %929
        %v931 = vsub.f32 %v925, %v930
        %v932 = vmul.f32 %v931, 1.442695
        %v933 = vpow.pop %v932
        %v934 = vsel %vm416, %v933, 0.0
        %935 = vadd.xlane.f32.xlu0 %v934
        %v936 = vpop.xlane.xlu0 %935
        %v937 = vrcp.pop %v936
        %v938 = vmul.f32 %v933, %v937
        %s939 = scalar_lea.vmem %s300, 24 [#allocation2]
        %940 = vst.msk [vmem:[%s939] sm:$0xff] %vm416, %v938
        %941 = vrot.lane.b32.xlu0 %v336, 32
        %v942 = vpop.permute.xlu0 %941
        %v945 = vsel %vm416, %v938, 0
        %947 = vmatprep.subr.mxu0 0.0
        %948 = vmatpush1.msra.mxu0 %v942
        %949 = vmatprep.subr.mxu0 0.0
        %950 = vmatpush1.msra.mxu0 0.0
        %951 = vmatprep.subr.mxu0 0.0
        %952 = vmatpush1.msra.mxu0 0.0
        %953 = vmatprep.subr.mxu0 0.0
        %954 = vmatpush1.msra.mxu0 0.0
        %955 = vmatprep.subr.mxu0 0.0
        %956 = vmatpush1.msra.mxu0 0.0
        %957 = vmatprep.subr.mxu0 0.0
        %958 = vmatpush1.msra.mxu0 0.0
        %959 = vmatprep.subr.mxu0 0.0
        %960 = vmatpush1.msra.mxu0 0.0
        %961 = vmatprep.subr.mxu0 0.0
        %962 = vmatpush1.msra.mxu0 0.0
        %963 = vmatprep.subr.mxu0 0.0
        %964 = vmatpush1.msra.mxu0 0.0
        %965 = vmatprep.subr.mxu0 0.0
        %966 = vmatpush1.msra.mxu0 0.0
        %967 = vmatprep.subr.mxu0 0.0
        %968 = vmatpush1.msra.mxu0 0.0
        %969 = vmatprep.subr.mxu0 0.0
        %970 = vmatpush1.msra.mxu0 0.0
        %971 = vmatprep.subr.mxu0 0.0
        %972 = vmatpush1.msra.mxu0 0.0
        %973 = vmatprep.subr.mxu0 0.0
        %974 = vmatpush1.msra.mxu0 0.0
        %975 = vmatprep.subr.mxu0 0.0
        %976 = vmatpush1.msra.mxu0 0.0
        %977 = vmatprep.subr.mxu0 0.0
        %978 = vmatpush1.msra.mxu0 0.0
        %979 = vmatprep.subr.mxu0 0.0
        %980 = vmatpush1.msra.mxu0 0.0
        %981 = vmatprep.subr.mxu0 0.0
        %982 = vmatpush1.msra.mxu0 0.0
        %983 = vmatprep.subr.mxu0 0.0
        %984 = vmatpush1.msra.mxu0 0.0
        %985 = vmatprep.subr.mxu0 0.0
        %986 = vmatpush1.msra.mxu0 0.0
        %987 = vmatprep.subr.mxu0 0.0
        %988 = vmatpush1.msra.mxu0 0.0
        %989 = vmatprep.subr.mxu0 0.0
        %990 = vmatpush1.msra.mxu0 0.0
        %991 = vmatprep.subr.mxu0 0.0
        %992 = vmatpush1.msra.mxu0 0.0
        %993 = vmatprep.subr.mxu0 0.0
        %994 = vmatpush1.msra.mxu0 0.0
        %995 = vmatprep.subr.mxu0 0.0
        %996 = vmatpush1.msra.mxu0 0.0
        %997 = vmatprep.subr.mxu0 0.0
        %998 = vmatpush1.msra.mxu0 0.0
        %999 = vmatprep.subr.mxu0 0.0
        %1000 = vmatpush1.msra.mxu0 0.0
        %1001 = vmatprep.subr.mxu0 0.0
        %1002 = vmatpush1.msra.mxu0 0.0
        %1003 = vmatprep.subr.mxu0 0.0
        %1004 = vmatpush1.msra.mxu0 0.0
        %1005 = vmatprep.subr.mxu0 0.0
        %1006 = vmatpush1.msra.mxu0 0.0
        %1007 = vmatprep.subr.mxu0 0.0
        %1008 = vmatpush1.msra.mxu0 0.0
        %1009 = vmatprep.subr.mxu0 0.0
        %1010 = vmatpush1.msra.mxu0 0.0
        %1011 = vmatprep.mubr.f32.mxu0 0.0
        %1012 = vmatmul.mubr.f32.gmra.mrb[0].mxu0 %v945
        %v1013 = vpop.f32.mrb[0].mxu0
        %v1014 = vadd.f32 0.0, %v1013
        %v1015 = vpop.f32.mrb[0].mxu0
        %1016 = vdwg.mxu0
        %1018 = vrot.lane.b32.xlu0 %v1014, 96
        %v1019 = vpop.permute.xlu0 %1018
        %vm1021 = vcmask 1048320
        %1022 = vst.msk [vmem:[%s332] sm:$0xff] %vm1021, %v1019
        %p1023 = scmp.lt.s32.totalorder %s24, 1
        %s1024 = scalar_select %p1023, %s24, 1
        %p1025 = scmp.lt.s32.totalorder %s25, 0
        %s1026 = scalar_select %p1025, %s25, 0
        %s1027 = sadd.s32 %s1026, %s1024
        %s1028 = smul.addr %s1027, 8
        %s1029 = scalar_lea.vmem %s4, %s1028
        %s1030 = sand.u32 %s176, 1
        %s1031 = scalar_lea.sflag [#allocation3], %s1030
        %s1032 = sand.u32 %s176, 1
        %s1033 = smul.addr %s1032, 32
        %s1034 = scalar_lea.vmem [#allocation2], %s1033
        // Predicated region
        $region37: #{_mha_self.4} parent=35 // pred_check
          %p1035 = pneg %p158
        $region38: #{_mha_self.4} parent=35 // pred_check_branch
          %1037 = sbr.rel (%p1035) target = $region40
        $region39: #{_mha_self.4} parent=35 // pred_region
          _
        $region40: #{_mha_self.4} parent=35 // pred_fallthru
          _
        // Predicated region
        $region41: #{_mha_self.4} parent=35 // pred_check
          %p1038 = pneg %p186
        $region42: #{_mha_self.4} parent=35 // pred_check_branch
          %1040 = sbr.rel (%p1038) target = $region44
        $region43: #{_mha_self.4} parent=35 // pred_region
          %s1042 = ssub.s32 512, 512
          %1043 = vsyncadd %s1031, %s1042
          %s1044 = smul.addr %s24, 4
          %s1045 = sadd.s32 %s25, %s1044
          %s1046 = smul.addr %s1045, 128
          %s1047 = scalar_lea.hbm %s5, %s1046
          %s1048 = sshll.u32 %s1034, 4
          %s1049 = int_to_ptr.vmem [resolvable:$true] %s1048
          %1054 = dma.vmem_to_hbm [thread:$0]  %s1049, 512, %s1047, %s1031, 128, 128, 8
        $region44: #{_mha_self.4} parent=35 // pred_fallthru
          _
      $region36: #{_mha_self.4} parent=5 // pred_fallthru
        _
      %p1055 = scmp.le.s32.totalorder 2, %s15
      // Predicated region
      $region45: #{_mha_self.4} parent=5 // pred_check
        %p1056 = pneg %p1055
      $region46: #{_mha_self.4} parent=5 // pred_check_branch
        %1058 = sbr.rel (%p1056) target = $region48
      $region47: #{_mha_self.4} parent=5 // pred_region
        %s1059 = ssub.s32 %s15, 2
        // Predicated region
        $region49: #{_mha_self.4} parent=47 // pred_check
          %p1060 = pneg %p164
        $region50: #{_mha_self.4} parent=47 // pred_check_branch
          %1062 = sbr.rel (%p1060) target = $region52
        $region51: #{_mha_self.4} parent=47 // pred_region
          %p1063 = scmp.lt.s32.totalorder %s26, 1
          %s1064 = scalar_select %p1063, %s26, 1
          %p1065 = scmp.lt.s32.totalorder %s27, 0
          %s1066 = scalar_select %p1065, %s27, 0
          %s1067 = sadd.s32 %s1066, %s1064
          %s1068 = smul.addr %s1067, 8
          %s1069 = scalar_lea.vmem %s4, %s1068
        $region52: #{_mha_self.4} parent=47 // pred_fallthru
          _
        // Predicated region
        $region53: #{_mha_self.4} parent=47 // pred_check
          %p1070 = pneg %p192
        $region54: #{_mha_self.4} parent=47 // pred_check_branch
          %1072 = sbr.rel (%p1070) target = $region56
        $region55: #{_mha_self.4} parent=47 // pred_region
          %s1073 = sand.u32 %s177, 1
          %s1074 = scalar_lea.sflag [#allocation3], %s1073
          %s1075 = sand.u32 %s177, 1
          %s1076 = smul.addr %s1075, 32
          %s1077 = scalar_lea.vmem [#allocation2], %s1076
          %1078 = dma.done %s1074, 512
        $region56: #{_mha_self.4} parent=47 // pred_fallthru
          _
      $region48: #{_mha_self.4} parent=5 // pred_fallthru
        _
    $region6: #{_mha_self.4} parent=1 // loop_footer
      %s19 = sadd.s32 1, %s15
    $region7: #{_mha_self.4} parent=1 // loop_footer_branch
      %14 = sbr.rel target = $region3
    $region8: #{_mha_self.4} parent=1 // loop_exit
      _
    %1079 = vsyncpa [#allocation3], 1
    %s1080 = scalar_lea.sflag [#allocation3], 1
    %1081 = vsyncpa %s1080, 1

</llo_original>
